<compile_context>
chip_gen: v7x
topology: tpu7x:2x2x1
jax: 0.10.0
libtpu: 0.0.40
codegen_flags: <defaults>
</compile_context>

<pallas_src>
import functools

import numpy as np
import jax
import jax.numpy as jnp
from jax.experimental import pallas as pl
from jax.experimental.pallas import tpu as pltpu

# ------------------------- small, module-consistent config -------------------
HIDDEN = 32            # config.hidden_size
EMB = 64               # emb_size
BLOCK = 16             # block_size
NB = EMB // BLOCK      # number of bilinear groups
NUM_CLASSES = 8        # config.num_labels
L_PAD = 128            # classifier columns padded to one full lane width
NUM_LABELS = -1        # DocREModel(num_labels=-1) -> no top-k in get_label
N_HEADS = 4
SEQ = 16
VOCAB = 50
OFFSET = 1             # transformer_type == 'bert'
TILE_P = 8             # pairs per grid tile (multiple of 8; use >=256 at real sizes)

# MXU operand dtype (accumulation is always f32).  bf16 is MXU-native on
# v6e/v7x and fine on v5e's MXU; elementwise math stays f32 for v5e.
MATMUL_DTYPE = jnp.bfloat16


def _mm(a, b):
    """Matmul with MXU-native operand dtype and f32 accumulation."""
    return jnp.dot(a.astype(MATMUL_DTYPE), b.astype(MATMUL_DTYPE),
                   preferred_element_type=jnp.float32)


# =============================== Pallas kernel ================================
def docre_pair_kernel(tile_doc_ref,                      # scalar prefetch (SMEM)
                      h_att_ref, t_att_ref, hs_ref, ts_ref, seq_ref,
                      msum_ref,
                      wh1_ref, wh2_ref, bh_ref,
                      wt1_ref, wt2_ref, bt_ref,
                      s1_ref, s2_ref, wb_ref, bb_ref,
                      logits_ref, pred_ref):
    """One tile of TILE_P entity pairs, fully fused.

    h_att/t_att : (TILE_P, H*C)  flattened entity-level attention of head/tail
    hs/ts       : (TILE_P, D)    pooled head/tail entity embeddings
    seq         : (1, C, D)      this tile's document contextual embeddings H
    msum        : (H*C, C)       block-sum matrix (mean over heads as a matmul)
    wh1/wh2/wt1/wt2 : (D, EMB)   split extractor weights (concat == split matmuls)
    bh/bt       : (1, EMB)
    s1/s2       : (EMB, EMB*BLOCK) 0/1 group-bilinear selection matrices
    wb          : (EMB*BLOCK, L_PAD) classifier weight padded to 128 lanes
    bb          : (1, L_PAD)
    outputs     : logits (TILE_P, L_PAD), pred (TILE_P, L_PAD)  (lane-dense)
    """
    del tile_doc_ref  # only consumed by the index_maps

    # --- localized context pooling:  rs = norm(mean_h(h_att*t_att)) @ H -------
    prod = h_att_ref[...] * t_att_ref[...]                       # (TP, H*C) f32
    q = _mm(prod, msum_ref[...])                                 # mean over heads (MXU)
    denom = jnp.sum(q, axis=1, keepdims=True) + 1e-5
    ht = q * pl.reciprocal(denom, approx=True)                   # a^(s,o) (EUP recip)
    rs = _mm(ht, seq_ref[0])                                     # (TP, D)   c^(s,o)

    # --- head/tail extractors (Linear + tanh); concat as split matmuls --------
    zh = _mm(hs_ref[...], wh1_ref[...]) + _mm(rs, wh2_ref[...]) + bh_ref[...]
    zt = _mm(ts_ref[...], wt1_ref[...]) + _mm(rs, wt2_ref[...]) + bt_ref[...]
    hs2 = jnp.tanh(zh)                                           # (TP, EMB) f32
    ts2 = jnp.tanh(zt)

    # --- group bilinear via static 0/1 selection matrices ---------------------
    b1e = _mm(hs2, s1_ref[...])                                  # (TP, EMB*BLOCK)
    b2e = _mm(ts2, s2_ref[...])
    bl = b1e * b2e

    # --- classifier (padded to L_PAD lanes -> unmasked stores) ----------------
    logits = _mm(bl, wb_ref[...]) + bb_ref[...]                  # (TP, L_PAD)
    logits_ref[...] = logits

    # --- ATLoss.get_label, num_labels=-1 (class 0 = TH); mask padded columns --
    # TODO(synk): top-k branch of get_label (num_labels > 0) not implemented.
    col = jax.lax.broadcasted_iota(jnp.int32, logits.shape, 1)
    valid = col < NUM_CLASSES
    th = logits[:, 0:1]
    pos = jnp.where((logits > th) & valid, 1.0, 0.0)
    no_pos = (jnp.sum(pos, axis=1, keepdims=True) == 0.0).astype(jnp.float32)
    pred_ref[...] = jnp.where(col == 0, no_pos, pos)


# ================================ wrappers ====================================
def pair_forward(kp, tile_doc, h_att, t_att, hs, ts, seq_out):
    """Single pallas_call over all pair tiles of all documents."""
    p_pad = hs.shape[0]
    num_tiles = p_pad // TILE_P
    hc = h_att.shape[1]
    seq_len, d = seq_out.shape[1], seq_out.shape[2]

    def tiled(bs):        # per-tile operand
        return pl.BlockSpec(bs, lambda i, td: (i, 0))

    def const(bs):        # weights: constant block index -> fetched once, stays in VMEM
        return pl.BlockSpec(bs, lambda i, td: (0, 0))

    grid_spec = pltpu.PrefetchScalarGridSpec(
        num_scalar_prefetch=1,                 # tile_doc -> SMEM, used in index_maps
        grid=(num_tiles,),
        in_specs=[
            tiled((TILE_P, hc)),               # h_att
            tiled((TILE_P, hc)),               # t_att
            tiled((TILE_P, HIDDEN)),           # hs
            tiled((TILE_P, HIDDEN)),           # ts
            pl.BlockSpec((1, seq_len, d), lambda i, td: (td[i], 0, 0)),  # per-doc H
            const((hc, seq_len)),              # Msum
            const((HIDDEN, EMB)),              # Wh1
            const((HIDDEN, EMB)),              # Wh2
            const((1, EMB)),                   # bh
            const((HIDDEN, EMB)),              # Wt1
            const((HIDDEN, EMB)),              # Wt2
            const((1, EMB)),                   # bt
            const((EMB, EMB * BLOCK)),         # S1
            const((EMB, EMB * BLOCK)),         # S2
            const((EMB * BLOCK, L_PAD)),       # Wb (padded)
            const((1, L_PAD)),                 # bb (padded)
        ],
        out_specs=[
            tiled((TILE_P, L_PAD)),            # logits (lane-dense)
            tiled((TILE_P, L_PAD)),            # preds  (lane-dense)
        ],
    )
    logits_pad, preds_pad = pl.pallas_call(
        docre_pair_kernel,
        out_shape=(jax.ShapeDtypeStruct((p_pad, L_PAD), jnp.float32),
                   jax.ShapeDtypeStruct((p_pad, L_PAD), jnp.float32)),
        grid_spec=grid_spec,
        compiler_params=pltpu.CompilerParams(
            dimension_semantics=("parallel",),          # v7x: shard tiles over 2 TCs
            vmem_limit_bytes=32 * 1024 * 1024),
    )(tile_doc, h_att, t_att, hs, ts, seq_out,
      kp["Msum"], kp["Wh1"], kp["Wh2"], kp["bh"],
      kp["Wt1"], kp["Wt2"], kp["bt"],
      kp["S1"], kp["S2"], kp["Wb"], kp["bb"])
    return logits_pad, preds_pad


# ============================ plain-JAX glue ==================================
def synthetic_encode(params, input_ids, attention_mask):
    # TODO(synk): `process_long_input` + the HF transformer encoder (self.model)
    # have no clean Pallas equivalent here; replaced by a deterministic
    # synthetic encoder (embedding lookup + masked softmax attention scores).
    seq_out = params["emb_table"][input_ids]                  # (B, S, D)
    scores = params["att_scores"]                             # (B, H, S, S)
    mask = attention_mask[:, None, None, :]                   # (B, 1, 1, S)
    scores = jnp.where(mask > 0, scores, -1e9)
    attention = jax.nn.softmax(scores, axis=-1)               # (B, H, S, S)
    return seq_out, attention


def _pool_entities(seq_out, attention, doc_entities, doc_idx):
    """Ragged mention->entity pooling for one document (logsumexp / mean)."""
    H, C = attention.shape[1], attention.shape[3]
    embs, atts = [], []
    for e in doc_entities:
        if len(e) > 1:
            e_emb, e_att = [], []
            for (start, _end) in e:
                if start + OFFSET < C:
                    e_emb.append(seq_out[doc_idx, start + OFFSET])
                    e_att.append(attention[doc_idx, :, start + OFFSET])
            if e_emb:
                emb = jax.nn.logsumexp(jnp.stack(e_emb, 0), axis=0)
                att = jnp.mean(jnp.stack(e_att, 0), axis=0)
            else:
                emb = jnp.zeros((HIDDEN,), jnp.float32)
                att = jnp.zeros((H, C), jnp.float32)
        else:
            start, _end = e[0]
            if start + OFFSET < C:
                emb = seq_out[doc_idx, start + OFFSET]
                att = attention[doc_idx, :, start + OFFSET]
            else:
                emb = jnp.zeros((HIDDEN,), jnp.float32)
                att = jnp.zeros((H, C), jnp.float32)
        embs.append(emb)
        atts.append(att)
    return jnp.stack(embs, 0), jnp.stack(atts, 0)             # (E, D), (E, H, C)


def _round_up(n, m):
    return ((n + m - 1) // m) * m


def _gather_pairs(seq_out, attention, entity_pos, hts):
    """Gather per-pair tensors for all docs, pad each doc to a multiple of
    TILE_P rows so a tile never spans two documents, and record tile->doc."""
    H, C = attention.shape[1], attention.shape[3]
    hs_l, ts_l, ha_l, ta_l = [], [], [], []
    tile_doc, spans = [], []
    row = 0
    for i in range(len(entity_pos)):
        entity_embs, entity_atts = _pool_entities(seq_out, attention, entity_pos[i], i)
        ht_i = np.asarray([list(p) for p in hts[i]], dtype=np.int32)   # (P_i, 2)
        p_i = ht_i.shape[0]
        hs = entity_embs[ht_i[:, 0]]                                   # (P_i, D)
        ts = entity_embs[ht_i[:, 1]]
        h_att = entity_atts[ht_i[:, 0]].reshape(p_i, H * C)            # (P_i, H*C)
        t_att = entity_atts[ht_i[:, 1]].reshape(p_i, H * C)
        p_pad = _round_up(p_i, TILE_P)
        pad = p_pad - p_i
        if pad:
            hs = jnp.concatenate([hs, jnp.zeros((pad, HIDDEN), jnp.float32)], 0)
            ts = jnp.concatenate([ts, jnp.zeros((pad, HIDDEN), jnp.float32)], 0)
            h_att = jnp.concatenate([h_att, jnp.zeros((pad, H * C), jnp.float32)], 0)
            t_att = jnp.concatenate([t_att, jnp.zeros((pad, H * C), jnp.float32)], 0)
        hs_l.append(hs); ts_l.append(ts); ha_l.append(h_att); ta_l.append(t_att)
        tile_doc.extend([i] * (p_pad // TILE_P))
        spans.append((row, p_i))
        row += p_pad
    return (jnp.concatenate(hs_l, 0), jnp.concatenate(ts_l, 0),
            jnp.concatenate(ha_l, 0), jnp.concatenate(ta_l, 0),
            jnp.asarray(tile_doc, jnp.int32), tuple(spans))


@functools.partial(jax.jit, static_argnums=(4, 5))
def docre_forward(params, kparams, input_ids, attention_mask, entity_pos, hts):
    seq_out, attention = synthetic_encode(params, input_ids, attention_mask)
    hs, ts, h_att, t_att, tile_doc, spans = _gather_pairs(
        seq_out, attention, entity_pos, hts)
    logits_pad, preds_pad = pair_forward(
        kparams, tile_doc, h_att, t_att, hs, ts, seq_out)
    # drop pair padding rows and the lane-padded classifier columns
    logits = jnp.concatenate([logits_pad[s:s + n, :NUM_CLASSES] for (s, n) in spans], 0)
    preds = jnp.concatenate([preds_pad[s:s + n, :NUM_CLASSES] for (s, n) in spans], 0)
    # labels=None path of DocREModel.forward -> output = (get_label(logits),)
    # TODO(synk): ATLoss training loss (labels != None branch) not implemented.
    return preds, logits


# ============================ reference (plain JAX) ===========================
def reference_forward(params, input_ids, attention_mask, entity_pos, hts):
    """Straightforward DocRE math (concat + view/outer-product group bilinear),
    mirroring the kernel's MXU operand dtype for an apples-to-apples check."""
    seq_out, attention = synthetic_encode(params, input_ids, attention_mask)
    hss, tss, rss = [], [], []
    for i in range(len(entity_pos)):
        entity_embs, entity_atts = _pool_entities(seq_out, attention, entity_pos[i], i)
        ht_i = np.asarray([list(p) for p in hts[i]], dtype=np.int32)
        hs = entity_embs[ht_i[:, 0]]
        ts = entity_embs[ht_i[:, 1]]
        h_att = entity_atts[ht_i[:, 0]]
        t_att = entity_atts[ht_i[:, 1]]
        ht_att = jnp.mean(h_att * t_att, axis=1)
        ht_att = ht_att / (jnp.sum(ht_att, axis=1, keepdims=True) + 1e-5)
        rs = _mm(ht_att, seq_out[i])
        hss.append(hs); tss.append(ts); rss.append(rs)
    hs = jnp.concatenate(hss, 0)
    ts = jnp.concatenate(tss, 0)
    rs = jnp.concatenate(rss, 0)
    hs2 = jnp.tanh(_mm(jnp.concatenate([hs, rs], 1), params["W_head"].T) + params["b_head"])
    ts2 = jnp.tanh(_mm(jnp.concatenate([ts, rs], 1), params["W_tail"].T) + params["b_tail"])
    P = hs2.shape[0]
    b1 = hs2.reshape(P, NB, BLOCK)
    b2 = ts2.reshape(P, NB, BLOCK)
    bl = (b1[:, :, :, None] * b2[:, :, None, :]).reshape(P, EMB * BLOCK)
    return _mm(bl, params["W_bil"].T) + params["b_bil"]


# ============================ parameter construction ==========================
def make_params():
    key = jax.random.PRNGKey(0)
    ks = jax.random.split(key, 8)
    return {
        # synthetic encoder
        "emb_table": jax.random.normal(ks[0], (VOCAB, HIDDEN), jnp.float32),
        "att_scores": jax.random.normal(ks[1], (2, N_HEADS, SEQ, SEQ), jnp.float32),
        # head_extractor: Linear(2*hidden, emb)
        "W_head": 0.05 * jax.random.normal(ks[2], (EMB, 2 * HIDDEN), jnp.float32),
        "b_head": 0.05 * jax.random.normal(ks[3], (EMB,), jnp.float32),
        # tail_extractor: Linear(2*hidden, emb)
        "W_tail": 0.05 * jax.random.normal(ks[4], (EMB, 2 * HIDDEN), jnp.float32),
        "b_tail": 0.05 * jax.random.normal(ks[5], (EMB,), jnp.float32),
        # bilinear: Linear(emb*block, num_labels)
        "W_bil": 0.02 * jax.random.normal(ks[6], (NUM_CLASSES, EMB * BLOCK), jnp.float32),
        "b_bil": 0.02 * jax.random.normal(ks[7], (NUM_CLASSES,), jnp.float32),
    }


def make_kernel_params(p):
    """Pre-transpose / pre-pad / pre-cast all kernel operands ONCE."""
    kp = {
        "Wh1": jnp.asarray(np.asarray(p["W_head"][:, :HIDDEN]).T, MATMUL_DTYPE),
        "Wh2": jnp.asarray(np.asarray(p["W_head"][:, HIDDEN:]).T, MATMUL_DTYPE),
        "bh": p["b_head"][None, :].astype(jnp.float32),
        "Wt1": jnp.asarray(np.asarray(p["W_tail"][:, :HIDDEN]).T, MATMUL_DTYPE),
        "Wt2": jnp.asarray(np.asarray(p["W_tail"][:, HIDDEN:]).T, MATMUL_DTYPE),
        "bt": p["b_tail"][None, :].astype(jnp.float32),
    }
    # classifier padded to L_PAD=128 lane-dense output columns
    wb = np.zeros((EMB * BLOCK, L_PAD), np.float32)
    wb[:, :NUM_CLASSES] = np.asarray(p["W_bil"]).T
    bb = np.zeros((1, L_PAD), np.float32)
    bb[0, :NUM_CLASSES] = np.asarray(p["b_bil"])
    kp["Wb"] = jnp.asarray(wb, MATMUL_DTYPE)
    kp["bb"] = jnp.asarray(bb, jnp.float32)
    # static 0/1 selection matrices encoding the group-bilinear view/outer-product
    # TODO(synk): at production dims (emb=768, block=64) S1/S2 are ~151 MiB each;
    # replace with a per-group tiled loop or stream group blocks from HBM
    # (memory_space=pl.ANY + manual DMA) before scaling up.
    k = np.arange(EMB * BLOCK)
    g = k // (BLOCK * BLOCK)
    i = (k % (BLOCK * BLOCK)) // BLOCK
    j = k % BLOCK
    m = np.arange(EMB)[:, None]
    kp["S1"] = jnp.asarray((m == (g * BLOCK + i)[None, :]).astype(np.float32), MATMUL_DTYPE)
    kp["S2"] = jnp.asarray((m == (g * BLOCK + j)[None, :]).astype(np.float32), MATMUL_DTYPE)
    # block-sum matrix: prod.reshape(P, H*C) @ Msum == prod.mean(axis=heads)
    hc = np.arange(N_HEADS * SEQ)
    msum = np.zeros((N_HEADS * SEQ, SEQ), np.float32)
    msum[hc, hc % SEQ] = 1.0 / N_HEADS            # 1/4 is exact in bf16
    kp["Msum"] = jnp.asarray(msum, MATMUL_DTYPE)
    return kp


# =================================== main =====================================
if __name__ == "__main__":
    base_params = make_params()
    kernel_params = make_kernel_params(base_params)

    key = jax.random.PRNGKey(0)
    input_ids = jax.random.randint(jax.random.fold_in(key, 1), (2, SEQ), 0, VOCAB)
    attention_mask = jnp.ones((2, SEQ), jnp.float32)

    # entity_pos: per-doc tuple of entities, each a tuple of (start, end) spans
    # (nested tuples so they can be passed as static jit args)
    entity_pos = (
        (((0, 1), (5, 6)), ((3, 4),), ((8, 9), (10, 11), (12, 13))),
        (((1, 2),), ((4, 5), (7, 8)), ((9, 10),)),
    )
    # hts: per-doc tuple of (head_idx, tail_idx) pairs (all ordered pairs, h != t)
    hts = tuple(
        tuple((h, t) for h in range(3) for t in range(3) if h != t)
        for _ in range(2)
    )

    preds, logits = docre_forward(
        base_params, kernel_params, input_ids, attention_mask, entity_pos, hts)
    jax.block_until_ready(preds)
    jax.block_until_ready(logits)

    # --- correctness: logits vs plain-JAX end-to-end reference ----------------
    ref_logits = reference_forward(
        base_params, input_ids, attention_mask, entity_pos, hts)
    np.testing.assert_allclose(np.asarray(logits), np.asarray(ref_logits),
                               rtol=1e-2, atol=1e-2)

    # --- correctness: in-kernel ATLoss.get_label (num_labels=-1) decode -------
    lg = np.asarray(logits)
    th = lg[:, :1]
    pos = (lg > th).astype(np.float32)
    ref_pred = pos.copy()
    ref_pred[:, 0] = (pos.sum(1) == 0).astype(np.float32)
    np.testing.assert_array_equal(np.asarray(preds), ref_pred)

    assert preds.shape == (12, NUM_CLASSES)
    print("KERNEL_OK")
</pallas_src>

<mosaic_0001>
module attributes {stable_mosaic.version = 11 : i64} {
  func.func @docre_pair_kernel(%arg0: i32, %arg1: memref<2xi32, #tpu.memory_space<smem>>, %arg2: memref<8x64xf32, #tpu.memory_space<vmem>>, %arg3: memref<8x64xf32, #tpu.memory_space<vmem>>, %arg4: memref<8x32xf32, #tpu.memory_space<vmem>>, %arg5: memref<8x32xf32, #tpu.memory_space<vmem>>, %arg6: memref<1x16x32xf32, #tpu.memory_space<vmem>>, %arg7: memref<64x16xbf16, #tpu.memory_space<vmem>>, %arg8: memref<32x64xbf16, #tpu.memory_space<vmem>>, %arg9: memref<32x64xbf16, #tpu.memory_space<vmem>>, %arg10: memref<1x64xf32, #tpu.memory_space<vmem>>, %arg11: memref<32x64xbf16, #tpu.memory_space<vmem>>, %arg12: memref<32x64xbf16, #tpu.memory_space<vmem>>, %arg13: memref<1x64xf32, #tpu.memory_space<vmem>>, %arg14: memref<64x1024xbf16, #tpu.memory_space<vmem>>, %arg15: memref<64x1024xbf16, #tpu.memory_space<vmem>>, %arg16: memref<1024x128xbf16, #tpu.memory_space<vmem>>, %arg17: memref<1x128xf32, #tpu.memory_space<vmem>>, %arg18: memref<8x128xf32, #tpu.memory_space<vmem>>, %arg19: memref<8x128xf32, #tpu.memory_space<vmem>>) attributes {dimension_semantics = [#tpu.dimension_semantics<parallel>], iteration_bounds = array<i64: 2>, scalar_prefetch = 1 : i64, scratch_operands = 0 : i64, tpu.core_type = #tpu.core_type<tc>, window_params = [{transform_indices = @transform_0, window_bounds = array<i64: 8, 64>}, {transform_indices = @transform_1, window_bounds = array<i64: 8, 64>}, {transform_indices = @transform_2, window_bounds = array<i64: 8, 32>}, {transform_indices = @transform_3, window_bounds = array<i64: 8, 32>}, {transform_indices = @transform_4, window_bounds = array<i64: 1, 16, 32>}, {pipeline_mode = #tpu.pipeline_mode<synchronous>, transform_indices = @transform_5, window_bounds = array<i64: 64, 16>}, {pipeline_mode = #tpu.pipeline_mode<synchronous>, transform_indices = @transform_6, window_bounds = array<i64: 32, 64>}, {pipeline_mode = #tpu.pipeline_mode<synchronous>, transform_indices = @transform_7, window_bounds = array<i64: 32, 64>}, {pipeline_mode = #tpu.pipeline_mode<synchronous>, transform_indices = @transform_8, window_bounds = array<i64: 1, 64>}, {pipeline_mode = #tpu.pipeline_mode<synchronous>, transform_indices = @transform_9, window_bounds = array<i64: 32, 64>}, {pipeline_mode = #tpu.pipeline_mode<synchronous>, transform_indices = @transform_10, window_bounds = array<i64: 32, 64>}, {pipeline_mode = #tpu.pipeline_mode<synchronous>, transform_indices = @transform_11, window_bounds = array<i64: 1, 64>}, {pipeline_mode = #tpu.pipeline_mode<synchronous>, transform_indices = @transform_12, window_bounds = array<i64: 64, 1024>}, {pipeline_mode = #tpu.pipeline_mode<synchronous>, transform_indices = @transform_13, window_bounds = array<i64: 64, 1024>}, {pipeline_mode = #tpu.pipeline_mode<synchronous>, transform_indices = @transform_14, window_bounds = array<i64: 1024, 128>}, {pipeline_mode = #tpu.pipeline_mode<synchronous>, transform_indices = @transform_15, window_bounds = array<i64: 1, 128>}, {transform_indices = @transform_16, window_bounds = array<i64: 8, 128>}, {transform_indices = @transform_17, window_bounds = array<i64: 8, 128>}]} {
    %c0 = arith.constant 0 : index
    %c0_0 = arith.constant 0 : index
    %0 = vector.load %arg2[%c0, %c0_0] : memref<8x64xf32, #tpu.memory_space<vmem>>, vector<8x64xf32>
    %c0_1 = arith.constant 0 : index
    %c0_2 = arith.constant 0 : index
    %1 = vector.load %arg3[%c0_1, %c0_2] : memref<8x64xf32, #tpu.memory_space<vmem>>, vector<8x64xf32>
    %2 = arith.mulf %0, %1 : vector<8x64xf32>
    %c0_3 = arith.constant 0 : index
    %c0_4 = arith.constant 0 : index
    %3 = vector.load %arg7[%c0_3, %c0_4] : memref<64x16xbf16, #tpu.memory_space<vmem>>, vector<64x16xbf16>
    %4 = arith.truncf %2 : vector<8x64xf32> to vector<8x64xbf16>
    %cst = arith.constant dense<0.000000e+00> : vector<8x16xf32>
    %5 = tpu.matmul %4, %3, %cst {dimension_numbers = #tpu.dot_dimension_numbers<[1], [0], [0], [1], [0, 0, 1, 1], [], []>} : vector<8x64xbf16>, vector<64x16xbf16>, vector<8x16xf32> -> vector<8x16xf32>
    %cst_5 = arith.constant dense<0.000000e+00> : vector<8xf32>
    %6 = vector.multi_reduction <add>, %5, %cst_5 [1] : vector<8x16xf32> to vector<8xf32>
    %7 = vector.shape_cast %6 : vector<8xf32> to vector<8x1xf32>
    %cst_6 = arith.constant 9.99999974E-6 : f32
    %8 = vector.broadcast %cst_6 : f32 to vector<8x1xf32>
    %9 = arith.addf %7, %8 : vector<8x1xf32>
    %10 = tpu.reciprocal %9 {approx = true} : vector<8x1xf32> -> vector<8x1xf32>
    %11 = vector.broadcast %10 : vector<8x1xf32> to vector<8x16xf32>
    %12 = arith.mulf %5, %11 : vector<8x16xf32>
    %c0_7 = arith.constant 0 : index
    %c0_8 = arith.constant 0 : index
    %c0_9 = arith.constant 0 : index
    %13 = vector.load %arg6[%c0_7, %c0_8, %c0_9] : memref<1x16x32xf32, #tpu.memory_space<vmem>>, vector<1x16x32xf32>
    %14 = vector.shape_cast %13 : vector<1x16x32xf32> to vector<16x32xf32>
    %15 = arith.truncf %12 : vector<8x16xf32> to vector<8x16xbf16>
    %16 = arith.truncf %14 : vector<16x32xf32> to vector<16x32xbf16>
    %cst_10 = arith.constant dense<0.000000e+00> : vector<8x32xf32>
    %17 = tpu.matmul %15, %16, %cst_10 {dimension_numbers = #tpu.dot_dimension_numbers<[1], [0], [0], [1], [0, 0, 1, 1], [], []>} : vector<8x16xbf16>, vector<16x32xbf16>, vector<8x32xf32> -> vector<8x32xf32>
    %c0_11 = arith.constant 0 : index
    %c0_12 = arith.constant 0 : index
    %18 = vector.load %arg4[%c0_11, %c0_12] : memref<8x32xf32, #tpu.memory_space<vmem>>, vector<8x32xf32>
    %c0_13 = arith.constant 0 : index
    %c0_14 = arith.constant 0 : index
    %19 = vector.load %arg8[%c0_13, %c0_14] : memref<32x64xbf16, #tpu.memory_space<vmem>>, vector<32x64xbf16>
    %20 = arith.truncf %18 : vector<8x32xf32> to vector<8x32xbf16>
    %cst_15 = arith.constant dense<0.000000e+00> : vector<8x64xf32>
    %21 = tpu.matmul %20, %19, %cst_15 {dimension_numbers = #tpu.dot_dimension_numbers<[1], [0], [0], [1], [0, 0, 1, 1], [], []>} : vector<8x32xbf16>, vector<32x64xbf16>, vector<8x64xf32> -> vector<8x64xf32>
    %c0_16 = arith.constant 0 : index
    %c0_17 = arith.constant 0 : index
    %22 = vector.load %arg9[%c0_16, %c0_17] : memref<32x64xbf16, #tpu.memory_space<vmem>>, vector<32x64xbf16>
    %23 = arith.truncf %17 : vector<8x32xf32> to vector<8x32xbf16>
    %cst_18 = arith.constant dense<0.000000e+00> : vector<8x64xf32>
    %24 = tpu.matmul %23, %22, %cst_18 {dimension_numbers = #tpu.dot_dimension_numbers<[1], [0], [0], [1], [0, 0, 1, 1], [], []>} : vector<8x32xbf16>, vector<32x64xbf16>, vector<8x64xf32> -> vector<8x64xf32>
    %25 = arith.addf %21, %24 : vector<8x64xf32>
    %c0_19 = arith.constant 0 : index
    %c0_20 = arith.constant 0 : index
    %26 = vector.load %arg10[%c0_19, %c0_20] : memref<1x64xf32, #tpu.memory_space<vmem>>, vector<1x64xf32>
    %27 = vector.broadcast %26 : vector<1x64xf32> to vector<8x64xf32>
    %28 = arith.addf %25, %27 : vector<8x64xf32>
    %c0_21 = arith.constant 0 : index
    %c0_22 = arith.constant 0 : index
    %29 = vector.load %arg5[%c0_21, %c0_22] : memref<8x32xf32, #tpu.memory_space<vmem>>, vector<8x32xf32>
    %c0_23 = arith.constant 0 : index
    %c0_24 = arith.constant 0 : index
    %30 = vector.load %arg11[%c0_23, %c0_24] : memref<32x64xbf16, #tpu.memory_space<vmem>>, vector<32x64xbf16>
    %31 = arith.truncf %29 : vector<8x32xf32> to vector<8x32xbf16>
    %cst_25 = arith.constant dense<0.000000e+00> : vector<8x64xf32>
    %32 = tpu.matmul %31, %30, %cst_25 {dimension_numbers = #tpu.dot_dimension_numbers<[1], [0], [0], [1], [0, 0, 1, 1], [], []>} : vector<8x32xbf16>, vector<32x64xbf16>, vector<8x64xf32> -> vector<8x64xf32>
    %c0_26 = arith.constant 0 : index
    %c0_27 = arith.constant 0 : index
    %33 = vector.load %arg12[%c0_26, %c0_27] : memref<32x64xbf16, #tpu.memory_space<vmem>>, vector<32x64xbf16>
    %34 = arith.truncf %17 : vector<8x32xf32> to vector<8x32xbf16>
    %cst_28 = arith.constant dense<0.000000e+00> : vector<8x64xf32>
    %35 = tpu.matmul %34, %33, %cst_28 {dimension_numbers = #tpu.dot_dimension_numbers<[1], [0], [0], [1], [0, 0, 1, 1], [], []>} : vector<8x32xbf16>, vector<32x64xbf16>, vector<8x64xf32> -> vector<8x64xf32>
    %36 = arith.addf %32, %35 : vector<8x64xf32>
    %c0_29 = arith.constant 0 : index
    %c0_30 = arith.constant 0 : index
    %37 = vector.load %arg13[%c0_29, %c0_30] : memref<1x64xf32, #tpu.memory_space<vmem>>, vector<1x64xf32>
    %38 = vector.broadcast %37 : vector<1x64xf32> to vector<8x64xf32>
    %39 = arith.addf %36, %38 : vector<8x64xf32>
    %40 = math.tanh %28 : vector<8x64xf32>
    %41 = math.tanh %39 : vector<8x64xf32>
    %c0_31 = arith.constant 0 : index
    %c0_32 = arith.constant 0 : index
    %42 = vector.load %arg14[%c0_31, %c0_32] : memref<64x1024xbf16, #tpu.memory_space<vmem>>, vector<64x1024xbf16>
    %43 = arith.truncf %40 : vector<8x64xf32> to vector<8x64xbf16>
    %cst_33 = arith.constant dense<0.000000e+00> : vector<8x1024xf32>
    %44 = tpu.matmul %43, %42, %cst_33 {dimension_numbers = #tpu.dot_dimension_numbers<[1], [0], [0], [1], [0, 0, 1, 1], [], []>} : vector<8x64xbf16>, vector<64x1024xbf16>, vector<8x1024xf32> -> vector<8x1024xf32>
    %c0_34 = arith.constant 0 : index
    %c0_35 = arith.constant 0 : index
    %45 = vector.load %arg15[%c0_34, %c0_35] : memref<64x1024xbf16, #tpu.memory_space<vmem>>, vector<64x1024xbf16>
    %46 = arith.truncf %41 : vector<8x64xf32> to vector<8x64xbf16>
    %cst_36 = arith.constant dense<0.000000e+00> : vector<8x1024xf32>
    %47 = tpu.matmul %46, %45, %cst_36 {dimension_numbers = #tpu.dot_dimension_numbers<[1], [0], [0], [1], [0, 0, 1, 1], [], []>} : vector<8x64xbf16>, vector<64x1024xbf16>, vector<8x1024xf32> -> vector<8x1024xf32>
    %48 = arith.mulf %44, %47 : vector<8x1024xf32>
    %c0_37 = arith.constant 0 : index
    %c0_38 = arith.constant 0 : index
    %49 = vector.load %arg16[%c0_37, %c0_38] : memref<1024x128xbf16, #tpu.memory_space<vmem>>, vector<1024x128xbf16>
    %50 = arith.truncf %48 : vector<8x1024xf32> to vector<8x1024xbf16>
    %cst_39 = arith.constant dense<0.000000e+00> : vector<8x128xf32>
    %51 = tpu.matmul %50, %49, %cst_39 {dimension_numbers = #tpu.dot_dimension_numbers<[1], [0], [0], [1], [0, 0, 1, 1], [], []>} : vector<8x1024xbf16>, vector<1024x128xbf16>, vector<8x128xf32> -> vector<8x128xf32>
    %c0_40 = arith.constant 0 : index
    %c0_41 = arith.constant 0 : index
    %52 = vector.load %arg17[%c0_40, %c0_41] : memref<1x128xf32, #tpu.memory_space<vmem>>, vector<1x128xf32>
    %53 = vector.broadcast %52 : vector<1x128xf32> to vector<8x128xf32>
    %54 = arith.addf %51, %53 : vector<8x128xf32>
    %c0_42 = arith.constant 0 : index
    %c0_43 = arith.constant 0 : index
    %55 = vector.load %arg18[%c0_42, %c0_43] : memref<8x128xf32, #tpu.memory_space<vmem>>, vector<8x128xf32>
    tpu.vector_store %arg18[%c0_42, %c0_43], %54 {strides = array<i32>} : memref<8x128xf32, #tpu.memory_space<vmem>>, vector<8x128xf32>,
    %56 = tpu.iota {dimensions = array<i32: 1>} : vector<8x128xi32>
    %c8_i32 = arith.constant 8 : i32
    %57 = vector.broadcast %c8_i32 : i32 to vector<8x128xi32>
    %58 = arith.cmpi slt, %56, %57 : vector<8x128xi32>
    %59 = vector.extract_strided_slice %54 {offsets = [0, 0], sizes = [8, 1], strides = [1, 1]} : vector<8x128xf32> to vector<8x1xf32>
    %60 = vector.broadcast %59 : vector<8x1xf32> to vector<8x128xf32>
    %61 = arith.cmpf ogt, %54, %60 : vector<8x128xf32>
    %62 = arith.andi %61, %58 : vector<8x128xi1>
    %cst_44 = arith.constant 1.000000e+00 : f32
    %cst_45 = arith.constant 0.000000e+00 : f32
    %63 = vector.broadcast %cst_44 : f32 to vector<8x128xf32>
    %64 = vector.broadcast %cst_45 : f32 to vector<8x128xf32>
    %65 = arith.select %62, %63, %64 : vector<8x128xi1>, vector<8x128xf32>
    %cst_46 = arith.constant dense<0.000000e+00> : vector<8xf32>
    %66 = vector.multi_reduction <add>, %65, %cst_46 [1] : vector<8x128xf32> to vector<8xf32>
    %67 = vector.shape_cast %66 : vector<8xf32> to vector<8x1xf32>
    %cst_47 = arith.constant 0.000000e+00 : f32
    %68 = vector.broadcast %cst_47 : f32 to vector<8x1xf32>
    %69 = arith.cmpf oeq, %67, %68 : vector<8x1xf32>
    %70 = arith.extui %69 : vector<8x1xi1> to vector<8x1xi32>
    %71 = arith.sitofp %70 : vector<8x1xi32> to vector<8x1xf32>
    %c0_i32 = arith.constant 0 : i32
    %72 = vector.broadcast %c0_i32 : i32 to vector<8x128xi32>
    %73 = arith.cmpi eq, %56, %72 : vector<8x128xi32>
    %74 = vector.shape_cast %71 : vector<8x1xf32> to vector<8x1xf32>
    %75 = vector.broadcast %74 : vector<8x1xf32> to vector<8x128xf32>
    %76 = arith.select %73, %75, %65 : vector<8x128xi1>, vector<8x128xf32>
    %c0_48 = arith.constant 0 : index
    %c0_49 = arith.constant 0 : index
    %77 = vector.load %arg19[%c0_48, %c0_49] : memref<8x128xf32, #tpu.memory_space<vmem>>, vector<8x128xf32>
    tpu.vector_store %arg19[%c0_48, %c0_49], %76 {strides = array<i32>} : memref<8x128xf32, #tpu.memory_space<vmem>>, vector<8x128xf32>,
    return
  }
  func.func @transform_0(%arg0: i32, %arg1: memref<2xi32, #tpu.memory_space<smem>>) -> (i32, i32) {
    %c0_i32 = arith.constant 0 : i32
    %c0_i32_0 = arith.constant 0 : i32
    return %arg0, %c0_i32 : i32, i32
  }
  func.func @transform_1(%arg0: i32, %arg1: memref<2xi32, #tpu.memory_space<smem>>) -> (i32, i32) {
    %c0_i32 = arith.constant 0 : i32
    %c0_i32_0 = arith.constant 0 : i32
    return %arg0, %c0_i32 : i32, i32
  }
  func.func @transform_2(%arg0: i32, %arg1: memref<2xi32, #tpu.memory_space<smem>>) -> (i32, i32) {
    %c0_i32 = arith.constant 0 : i32
    %c0_i32_0 = arith.constant 0 : i32
    return %arg0, %c0_i32 : i32, i32
  }
  func.func @transform_3(%arg0: i32, %arg1: memref<2xi32, #tpu.memory_space<smem>>) -> (i32, i32) {
    %c0_i32 = arith.constant 0 : i32
    %c0_i32_0 = arith.constant 0 : i32
    return %arg0, %c0_i32 : i32, i32
  }
  func.func @transform_4(%arg0: i32, %arg1: memref<2xi32, #tpu.memory_space<smem>>) -> (i32, i32, i32) {
    %0 = arith.index_cast %arg0 : i32 to index
    %1 = memref.load %arg1[%0] : memref<2xi32, #tpu.memory_space<smem>>
    %c0_i32 = arith.constant 0 : i32
    %c0_i32_0 = arith.constant 0 : i32
    %c0_i32_1 = arith.constant 0 : i32
    return %1, %c0_i32, %c0_i32_0 : i32, i32, i32
  }
  func.func @transform_5(%arg0: i32, %arg1: memref<2xi32, #tpu.memory_space<smem>>) -> (i32, i32) {
    %c0_i32 = arith.constant 0 : i32
    %c0_i32_0 = arith.constant 0 : i32
    %c0_i32_1 = arith.constant 0 : i32
    return %c0_i32, %c0_i32_0 : i32, i32
  }
  func.func @transform_6(%arg0: i32, %arg1: memref<2xi32, #tpu.memory_space<smem>>) -> (i32, i32) {
    %c0_i32 = arith.constant 0 : i32
    %c0_i32_0 = arith.constant 0 : i32
    %c0_i32_1 = arith.constant 0 : i32
    return %c0_i32, %c0_i32_0 : i32, i32
  }
  func.func @transform_7(%arg0: i32, %arg1: memref<2xi32, #tpu.memory_space<smem>>) -> (i32, i32) {
    %c0_i32 = arith.constant 0 : i32
    %c0_i32_0 = arith.constant 0 : i32
    %c0_i32_1 = arith.constant 0 : i32
    return %c0_i32, %c0_i32_0 : i32, i32
  }
  func.func @transform_8(%arg0: i32, %arg1: memref<2xi32, #tpu.memory_space<smem>>) -> (i32, i32) {
    %c0_i32 = arith.constant 0 : i32
    %c0_i32_0 = arith.constant 0 : i32
    %c0_i32_1 = arith.constant 0 : i32
    return %c0_i32, %c0_i32_0 : i32, i32
  }
  func.func @transform_9(%arg0: i32, %arg1: memref<2xi32, #tpu.memory_space<smem>>) -> (i32, i32) {
    %c0_i32 = arith.constant 0 : i32
    %c0_i32_0 = arith.constant 0 : i32
    %c0_i32_1 = arith.constant 0 : i32
    return %c0_i32, %c0_i32_0 : i32, i32
  }
  func.func @transform_10(%arg0: i32, %arg1: memref<2xi32, #tpu.memory_space<smem>>) -> (i32, i32) {
    %c0_i32 = arith.constant 0 : i32
    %c0_i32_0 = arith.constant 0 : i32
    %c0_i32_1 = arith.constant 0 : i32
    return %c0_i32, %c0_i32_0 : i32, i32
  }
  func.func @transform_11(%arg0: i32, %arg1: memref<2xi32, #tpu.memory_space<smem>>) -> (i32, i32) {
    %c0_i32 = arith.constant 0 : i32
    %c0_i32_0 = arith.constant 0 : i32
    %c0_i32_1 = arith.constant 0 : i32
    return %c0_i32, %c0_i32_0 : i32, i32
  }
  func.func @transform_12(%arg0: i32, %arg1: memref<2xi32, #tpu.memory_space<smem>>) -> (i32, i32) {
    %c0_i32 = arith.constant 0 : i32
    %c0_i32_0 = arith.constant 0 : i32
    %c0_i32_1 = arith.constant 0 : i32
    return %c0_i32, %c0_i32_0 : i32, i32
  }
  func.func @transform_13(%arg0: i32, %arg1: memref<2xi32, #tpu.memory_space<smem>>) -> (i32, i32) {
    %c0_i32 = arith.constant 0 : i32
    %c0_i32_0 = arith.constant 0 : i32
    %c0_i32_1 = arith.constant 0 : i32
    return %c0_i32, %c0_i32_0 : i32, i32
  }
  func.func @transform_14(%arg0: i32, %arg1: memref<2xi32, #tpu.memory_space<smem>>) -> (i32, i32) {
    %c0_i32 = arith.constant 0 : i32
    %c0_i32_0 = arith.constant 0 : i32
    %c0_i32_1 = arith.constant 0 : i32
    return %c0_i32, %c0_i32_0 : i32, i32
  }
  func.func @transform_15(%arg0: i32, %arg1: memref<2xi32, #tpu.memory_space<smem>>) -> (i32, i32) {
    %c0_i32 = arith.constant 0 : i32
    %c0_i32_0 = arith.constant 0 : i32
    %c0_i32_1 = arith.constant 0 : i32
    return %c0_i32, %c0_i32_0 : i32, i32
  }
  func.func @transform_16(%arg0: i32, %arg1: memref<2xi32, #tpu.memory_space<smem>>) -> (i32, i32) {
    %c0_i32 = arith.constant 0 : i32
    %c0_i32_0 = arith.constant 0 : i32
    return %arg0, %c0_i32 : i32, i32
  }
  func.func @transform_17(%arg0: i32, %arg1: memref<2xi32, #tpu.memory_space<smem>>) -> (i32, i32) {
    %c0_i32 = arith.constant 0 : i32
    %c0_i32_0 = arith.constant 0 : i32
    return %arg0, %c0_i32 : i32, i32
  }
}

</mosaic_0001>

<llo_original>
// kernel: docre_forward.1
$region0: #{docre_forward.1}
  #allocation0 [shape = 'u32[]', space=smem, size = 0x4, offset = 0x4, fixed_abs, tag = 'smem constant byte address 0x4 - core index']
  #allocation1 [shape = 'u32[144,128]{1,0:T(1,128)}', space=vmem, size = 0x12000, scoped, tag = 'internal scratch']
  #allocation2 [shape = 's32[1]{0}', space=sflag, size = 0x4, scoped, tag = 'scoped memory for docre_forward.1']
  #allocation3 [shape = 'u8[512]{0}', space=smem, size = 0x200, scoped, tag = 'prefetched SMEM operand 0']
  %s0 = inlined_call_operand.vmem [shape: s32[2], index: 0, kind: input, shape index: {}]
  %s1 = inlined_call_operand.vmem [shape: f32[16,64], index: 1, kind: input, shape index: {}]
  %s2 = inlined_call_operand.vmem [shape: f32[16,64], index: 2, kind: input, shape index: {}]
  %s3 = inlined_call_operand.vmem [shape: f32[16,32], index: 3, kind: input, shape index: {}]
  %s4 = inlined_call_operand.vmem [shape: f32[16,32], index: 4, kind: input, shape index: {}]
  %s5 = inlined_call_operand.vmem [shape: f32[2,16,32], index: 5, kind: input, shape index: {}]
  %s6 = inlined_call_operand.vmem [shape: bf16[64,16], index: 6, kind: input, shape index: {}]
  %s7 = inlined_call_operand.vmem [shape: bf16[32,64], index: 7, kind: input, shape index: {}]
  %s8 = inlined_call_operand.vmem [shape: bf16[32,64], index: 8, kind: input, shape index: {}]
  %s9 = inlined_call_operand.vmem [shape: f32[1,64], index: 9, kind: input, shape index: {}]
  %s10 = inlined_call_operand.vmem [shape: bf16[32,64], index: 10, kind: input, shape index: {}]
  %s11 = inlined_call_operand.vmem [shape: bf16[32,64], index: 11, kind: input, shape index: {}]
  %s12 = inlined_call_operand.vmem [shape: f32[1,64], index: 12, kind: input, shape index: {}]
  %s13 = inlined_call_operand.vmem [shape: bf16[64,1024], index: 13, kind: input, shape index: {}]
  %s14 = inlined_call_operand.vmem [shape: bf16[64,1024], index: 14, kind: input, shape index: {}]
  %s15 = inlined_call_operand.vmem [shape: bf16[1024,128], index: 15, kind: input, shape index: {}]
  %s16 = inlined_call_operand.vmem [shape: f32[1,128], index: 16, kind: input, shape index: {}]
  %s17 = inlined_call_operand.vmem [shape: f32[16,128], index: 17, kind: output, shape index: {0}]
  %s18 = inlined_call_operand.vmem [shape: f32[16,128], index: 18, kind: output, shape index: {1}]
  %19 = xla_tuple %s17, %s18
  %s20 = sld [smem:[#allocation0]]
  $region105: #{docre_forward.1} parent=0
    _
  %s22 = ssub.s32 1, %s20
  %s23 = scalar_select 0, %s22, %s20
  %s24 = sshll.u32 %s0, 4
  %s25 = int_to_ptr.vmem [resolvable:$true] %s24
  %27 = dma.vmem_to_smem %s25, 16, [#allocation3], [#allocation2]
  %28 = dma.done [#allocation2], 16
  %29 = sfence
  loop: start=0, step=1, limit=4
  $region2: #{docre_forward.1} parent=0 // loop_pre_header
    _
  $region3: #{docre_forward.1} parent=0 // loop_header
    %s31 = sphi 0, %s35
    %p32 = scmp.ge.s32.totalorder %s31, 4
    %s41 = sphi 0, %s43
    %s44 = sphi 0, %s41
    %s45 = sphi 0, %s44
    %s61 = sphi 0, %s45
    %s67 = sphi 0, %s69
    %s70 = sphi 0, %s67
    %s71 = sphi 0, %s70
    %s87 = sphi 0, %s71
    %s93 = sphi 0, %s95
    %s96 = sphi 0, %s93
    %s97 = sphi 0, %s96
    %s113 = sphi 0, %s97
    %s119 = sphi 0, %s121
    %s122 = sphi 0, %s119
    %s123 = sphi 0, %s122
    %s139 = sphi 0, %s123
    %s147 = sphi 0, %s149
    %s150 = sphi 0, %s147
    %s151 = sphi 0, %s150
    %s167 = sphi 0, %s151
    %s171 = sphi 0, %s171
    %s173 = sphi 0, %s171
    %s174 = sphi 0, %s173
    %s188 = sphi 0, %s174
    %s192 = sphi 0, %s192
    %s194 = sphi 0, %s192
    %s195 = sphi 0, %s194
    %s209 = sphi 0, %s195
    %s213 = sphi 0, %s213
    %s215 = sphi 0, %s213
    %s216 = sphi 0, %s215
    %s230 = sphi 0, %s216
    %s234 = sphi 0, %s234
    %s236 = sphi 0, %s234
    %s237 = sphi 0, %s236
    %s251 = sphi 0, %s237
    %s255 = sphi 0, %s255
    %s257 = sphi 0, %s255
    %s258 = sphi 0, %s257
    %s272 = sphi 0, %s258
    %s276 = sphi 0, %s276
    %s278 = sphi 0, %s276
    %s279 = sphi 0, %s278
    %s293 = sphi 0, %s279
    %s297 = sphi 0, %s297
    %s299 = sphi 0, %s297
    %s300 = sphi 0, %s299
    %s314 = sphi 0, %s300
    %s318 = sphi 0, %s318
    %s320 = sphi 0, %s318
    %s321 = sphi 0, %s320
    %s335 = sphi 0, %s321
    %s339 = sphi 0, %s339
    %s341 = sphi 0, %s339
    %s342 = sphi 0, %s341
    %s356 = sphi 0, %s342
    %s360 = sphi 0, %s360
    %s362 = sphi 0, %s360
    %s363 = sphi 0, %s362
    %s377 = sphi 0, %s363
    %s381 = sphi 0, %s381
    %s383 = sphi 0, %s381
    %s384 = sphi 0, %s383
    %s398 = sphi 0, %s384
    %s404 = sphi 0, %s406
    %s407 = sphi 0, %s404
    %s408 = sphi 0, %s407
    %s424 = sphi 0, %s408
    %s430 = sphi 0, %s432
    %s433 = sphi 0, %s430
    %s434 = sphi 0, %s433
    %s450 = sphi 0, %s434
  $region4: #{docre_forward.1} parent=0 // loop_header_branch
    %34 = sbr.rel (%p32) target = $region8
  $region5: #{docre_forward.1} parent=0 // loop_body
    %s36 = ssub.s32 %s31, 1
    %s37 = ssub.s32 %s31, 2
    %s38 = sadd.s32 %s31, 1
    %s39 = ssub.s32 %s31, %s38
    %p40 = scmp.eq.s32.totalorder %s39, 0
    %s42 = sadd.s32 %s41, 1
    %s43 = scalar_select %p40, %s41, %s42
    %p46 = pneg %p40
    %p47 = scmp.eq.s32.totalorder %s31, 1
    %p48 = por %p46, %p47
    %p49 = scmp.ne.s32.totalorder %s41, %s44
    %p50 = scmp.eq.s32.totalorder %s31, 0
    %p51 = por %p49, %p50
    %p52 = scmp.ne.s32.totalorder %s41, %s44
    %p53 = scmp.eq.s32.totalorder %s36, 1
    %p54 = por %p52, %p53
    %p55 = scmp.ne.s32.totalorder %s44, %s45
    %p56 = scmp.eq.s32.totalorder %s36, 0
    %p57 = por %p55, %p56
    %p58 = scmp.ne.s32.totalorder %s44, %s45
    %p59 = scmp.eq.s32.totalorder %s37, 1
    %p60 = por %p58, %p59
    %p62 = scmp.ne.s32.totalorder %s45, %s61
    %p63 = scmp.eq.s32.totalorder %s37, 0
    %p64 = por %p62, %p63
    %s65 = ssub.s32 %s31, %s38
    %p66 = scmp.eq.s32.totalorder %s65, 0
    %s68 = sadd.s32 %s67, 1
    %s69 = scalar_select %p66, %s67, %s68
    %p72 = pneg %p66
    %p73 = scmp.eq.s32.totalorder %s31, 1
    %p74 = por %p72, %p73
    %p75 = scmp.ne.s32.totalorder %s67, %s70
    %p76 = scmp.eq.s32.totalorder %s31, 0
    %p77 = por %p75, %p76
    %p78 = scmp.ne.s32.totalorder %s67, %s70
    %p79 = scmp.eq.s32.totalorder %s36, 1
    %p80 = por %p78, %p79
    %p81 = scmp.ne.s32.totalorder %s70, %s71
    %p82 = scmp.eq.s32.totalorder %s36, 0
    %p83 = por %p81, %p82
    %p84 = scmp.ne.s32.totalorder %s70, %s71
    %p85 = scmp.eq.s32.totalorder %s37, 1
    %p86 = por %p84, %p85
    %p88 = scmp.ne.s32.totalorder %s71, %s87
    %p89 = scmp.eq.s32.totalorder %s37, 0
    %p90 = por %p88, %p89
    %s91 = ssub.s32 %s31, %s38
    %p92 = scmp.eq.s32.totalorder %s91, 0
    %s94 = sadd.s32 %s93, 1
    %s95 = scalar_select %p92, %s93, %s94
    %p98 = pneg %p92
    %p99 = scmp.eq.s32.totalorder %s31, 1
    %p100 = por %p98, %p99
    %p101 = scmp.ne.s32.totalorder %s93, %s96
    %p102 = scmp.eq.s32.totalorder %s31, 0
    %p103 = por %p101, %p102
    %p104 = scmp.ne.s32.totalorder %s93, %s96
    %p105 = scmp.eq.s32.totalorder %s36, 1
    %p106 = por %p104, %p105
    %p107 = scmp.ne.s32.totalorder %s96, %s97
    %p108 = scmp.eq.s32.totalorder %s36, 0
    %p109 = por %p107, %p108
    %p110 = scmp.ne.s32.totalorder %s96, %s97
    %p111 = scmp.eq.s32.totalorder %s37, 1
    %p112 = por %p110, %p111
    %p114 = scmp.ne.s32.totalorder %s97, %s113
    %p115 = scmp.eq.s32.totalorder %s37, 0
    %p116 = por %p114, %p115
    %s117 = ssub.s32 %s31, %s38
    %p118 = scmp.eq.s32.totalorder %s117, 0
    %s120 = sadd.s32 %s119, 1
    %s121 = scalar_select %p118, %s119, %s120
    %p124 = pneg %p118
    %p125 = scmp.eq.s32.totalorder %s31, 1
    %p126 = por %p124, %p125
    %p127 = scmp.ne.s32.totalorder %s119, %s122
    %p128 = scmp.eq.s32.totalorder %s31, 0
    %p129 = por %p127, %p128
    %p130 = scmp.ne.s32.totalorder %s119, %s122
    %p131 = scmp.eq.s32.totalorder %s36, 1
    %p132 = por %p130, %p131
    %p133 = scmp.ne.s32.totalorder %s122, %s123
    %p134 = scmp.eq.s32.totalorder %s36, 0
    %p135 = por %p133, %p134
    %p136 = scmp.ne.s32.totalorder %s122, %s123
    %p137 = scmp.eq.s32.totalorder %s37, 1
    %p138 = por %p136, %p137
    %p140 = scmp.ne.s32.totalorder %s123, %s139
    %p141 = scmp.eq.s32.totalorder %s37, 0
    %p142 = por %p140, %p141
    %s143 = sld [smem:[#allocation3 + %s31]]
    %s144 = sld [smem:[#allocation3 + %s38]]
    %s145 = ssub.s32 %s143, %s144
    %p146 = scmp.eq.s32.totalorder %s145, 0
    %s148 = sadd.s32 %s147, 1
    %s149 = scalar_select %p146, %s147, %s148
    %p152 = pneg %p146
    %p153 = scmp.eq.s32.totalorder %s31, 1
    %p154 = por %p152, %p153
    %p155 = scmp.ne.s32.totalorder %s147, %s150
    %p156 = scmp.eq.s32.totalorder %s31, 0
    %p157 = por %p155, %p156
    %p158 = scmp.ne.s32.totalorder %s147, %s150
    %p159 = scmp.eq.s32.totalorder %s36, 1
    %p160 = por %p158, %p159
    %p161 = scmp.ne.s32.totalorder %s150, %s151
    %p162 = scmp.eq.s32.totalorder %s36, 0
    %p163 = por %p161, %p162
    %p164 = scmp.ne.s32.totalorder %s150, %s151
    %p165 = scmp.eq.s32.totalorder %s37, 1
    %p166 = por %p164, %p165
    %p168 = scmp.ne.s32.totalorder %s151, %s167
    %p169 = scmp.eq.s32.totalorder %s37, 0
    %p170 = por %p168, %p169
    %s172 = sadd.s32 %s171, 1
    %p175 = scmp.eq.s32.totalorder %s31, 1
    %p176 = scmp.ne.s32.totalorder %s171, %s173
    %p177 = scmp.eq.s32.totalorder %s31, 0
    %p178 = por %p176, %p177
    %p179 = scmp.ne.s32.totalorder %s171, %s173
    %p180 = scmp.eq.s32.totalorder %s36, 1
    %p181 = por %p179, %p180
    %p182 = scmp.ne.s32.totalorder %s173, %s174
    %p183 = scmp.eq.s32.totalorder %s36, 0
    %p184 = por %p182, %p183
    %p185 = scmp.ne.s32.totalorder %s173, %s174
    %p186 = scmp.eq.s32.totalorder %s37, 1
    %p187 = por %p185, %p186
    %p189 = scmp.ne.s32.totalorder %s174, %s188
    %p190 = scmp.eq.s32.totalorder %s37, 0
    %p191 = por %p189, %p190
    %s193 = sadd.s32 %s192, 1
    %p196 = scmp.eq.s32.totalorder %s31, 1
    %p197 = scmp.ne.s32.totalorder %s192, %s194
    %p198 = scmp.eq.s32.totalorder %s31, 0
    %p199 = por %p197, %p198
    %p200 = scmp.ne.s32.totalorder %s192, %s194
    %p201 = scmp.eq.s32.totalorder %s36, 1
    %p202 = por %p200, %p201
    %p203 = scmp.ne.s32.totalorder %s194, %s195
    %p204 = scmp.eq.s32.totalorder %s36, 0
    %p205 = por %p203, %p204
    %p206 = scmp.ne.s32.totalorder %s194, %s195
    %p207 = scmp.eq.s32.totalorder %s37, 1
    %p208 = por %p206, %p207
    %p210 = scmp.ne.s32.totalorder %s195, %s209
    %p211 = scmp.eq.s32.totalorder %s37, 0
    %p212 = por %p210, %p211
    %s214 = sadd.s32 %s213, 1
    %p217 = scmp.eq.s32.totalorder %s31, 1
    %p218 = scmp.ne.s32.totalorder %s213, %s215
    %p219 = scmp.eq.s32.totalorder %s31, 0
    %p220 = por %p218, %p219
    %p221 = scmp.ne.s32.totalorder %s213, %s215
    %p222 = scmp.eq.s32.totalorder %s36, 1
    %p223 = por %p221, %p222
    %p224 = scmp.ne.s32.totalorder %s215, %s216
    %p225 = scmp.eq.s32.totalorder %s36, 0
    %p226 = por %p224, %p225
    %p227 = scmp.ne.s32.totalorder %s215, %s216
    %p228 = scmp.eq.s32.totalorder %s37, 1
    %p229 = por %p227, %p228
    %p231 = scmp.ne.s32.totalorder %s216, %s230
    %p232 = scmp.eq.s32.totalorder %s37, 0
    %p233 = por %p231, %p232
    %s235 = sadd.s32 %s234, 1
    %p238 = scmp.eq.s32.totalorder %s31, 1
    %p239 = scmp.ne.s32.totalorder %s234, %s236
    %p240 = scmp.eq.s32.totalorder %s31, 0
    %p241 = por %p239, %p240
    %p242 = scmp.ne.s32.totalorder %s234, %s236
    %p243 = scmp.eq.s32.totalorder %s36, 1
    %p244 = por %p242, %p243
    %p245 = scmp.ne.s32.totalorder %s236, %s237
    %p246 = scmp.eq.s32.totalorder %s36, 0
    %p247 = por %p245, %p246
    %p248 = scmp.ne.s32.totalorder %s236, %s237
    %p249 = scmp.eq.s32.totalorder %s37, 1
    %p250 = por %p248, %p249
    %p252 = scmp.ne.s32.totalorder %s237, %s251
    %p253 = scmp.eq.s32.totalorder %s37, 0
    %p254 = por %p252, %p253
    %s256 = sadd.s32 %s255, 1
    %p259 = scmp.eq.s32.totalorder %s31, 1
    %p260 = scmp.ne.s32.totalorder %s255, %s257
    %p261 = scmp.eq.s32.totalorder %s31, 0
    %p262 = por %p260, %p261
    %p263 = scmp.ne.s32.totalorder %s255, %s257
    %p264 = scmp.eq.s32.totalorder %s36, 1
    %p265 = por %p263, %p264
    %p266 = scmp.ne.s32.totalorder %s257, %s258
    %p267 = scmp.eq.s32.totalorder %s36, 0
    %p268 = por %p266, %p267
    %p269 = scmp.ne.s32.totalorder %s257, %s258
    %p270 = scmp.eq.s32.totalorder %s37, 1
    %p271 = por %p269, %p270
    %p273 = scmp.ne.s32.totalorder %s258, %s272
    %p274 = scmp.eq.s32.totalorder %s37, 0
    %p275 = por %p273, %p274
    %s277 = sadd.s32 %s276, 1
    %p280 = scmp.eq.s32.totalorder %s31, 1
    %p281 = scmp.ne.s32.totalorder %s276, %s278
    %p282 = scmp.eq.s32.totalorder %s31, 0
    %p283 = por %p281, %p282
    %p284 = scmp.ne.s32.totalorder %s276, %s278
    %p285 = scmp.eq.s32.totalorder %s36, 1
    %p286 = por %p284, %p285
    %p287 = scmp.ne.s32.totalorder %s278, %s279
    %p288 = scmp.eq.s32.totalorder %s36, 0
    %p289 = por %p287, %p288
    %p290 = scmp.ne.s32.totalorder %s278, %s279
    %p291 = scmp.eq.s32.totalorder %s37, 1
    %p292 = por %p290, %p291
    %p294 = scmp.ne.s32.totalorder %s279, %s293
    %p295 = scmp.eq.s32.totalorder %s37, 0
    %p296 = por %p294, %p295
    %s298 = sadd.s32 %s297, 1
    %p301 = scmp.eq.s32.totalorder %s31, 1
    %p302 = scmp.ne.s32.totalorder %s297, %s299
    %p303 = scmp.eq.s32.totalorder %s31, 0
    %p304 = por %p302, %p303
    %p305 = scmp.ne.s32.totalorder %s297, %s299
    %p306 = scmp.eq.s32.totalorder %s36, 1
    %p307 = por %p305, %p306
    %p308 = scmp.ne.s32.totalorder %s299, %s300
    %p309 = scmp.eq.s32.totalorder %s36, 0
    %p310 = por %p308, %p309
    %p311 = scmp.ne.s32.totalorder %s299, %s300
    %p312 = scmp.eq.s32.totalorder %s37, 1
    %p313 = por %p311, %p312
    %p315 = scmp.ne.s32.totalorder %s300, %s314
    %p316 = scmp.eq.s32.totalorder %s37, 0
    %p317 = por %p315, %p316
    %s319 = sadd.s32 %s318, 1
    %p322 = scmp.eq.s32.totalorder %s31, 1
    %p323 = scmp.ne.s32.totalorder %s318, %s320
    %p324 = scmp.eq.s32.totalorder %s31, 0
    %p325 = por %p323, %p324
    %p326 = scmp.ne.s32.totalorder %s318, %s320
    %p327 = scmp.eq.s32.totalorder %s36, 1
    %p328 = por %p326, %p327
    %p329 = scmp.ne.s32.totalorder %s320, %s321
    %p330 = scmp.eq.s32.totalorder %s36, 0
    %p331 = por %p329, %p330
    %p332 = scmp.ne.s32.totalorder %s320, %s321
    %p333 = scmp.eq.s32.totalorder %s37, 1
    %p334 = por %p332, %p333
    %p336 = scmp.ne.s32.totalorder %s321, %s335
    %p337 = scmp.eq.s32.totalorder %s37, 0
    %p338 = por %p336, %p337
    %s340 = sadd.s32 %s339, 1
    %p343 = scmp.eq.s32.totalorder %s31, 1
    %p344 = scmp.ne.s32.totalorder %s339, %s341
    %p345 = scmp.eq.s32.totalorder %s31, 0
    %p346 = por %p344, %p345
    %p347 = scmp.ne.s32.totalorder %s339, %s341
    %p348 = scmp.eq.s32.totalorder %s36, 1
    %p349 = por %p347, %p348
    %p350 = scmp.ne.s32.totalorder %s341, %s342
    %p351 = scmp.eq.s32.totalorder %s36, 0
    %p352 = por %p350, %p351
    %p353 = scmp.ne.s32.totalorder %s341, %s342
    %p354 = scmp.eq.s32.totalorder %s37, 1
    %p355 = por %p353, %p354
    %p357 = scmp.ne.s32.totalorder %s342, %s356
    %p358 = scmp.eq.s32.totalorder %s37, 0
    %p359 = por %p357, %p358
    %s361 = sadd.s32 %s360, 1
    %p364 = scmp.eq.s32.totalorder %s31, 1
    %p365 = scmp.ne.s32.totalorder %s360, %s362
    %p366 = scmp.eq.s32.totalorder %s31, 0
    %p367 = por %p365, %p366
    %p368 = scmp.ne.s32.totalorder %s360, %s362
    %p369 = scmp.eq.s32.totalorder %s36, 1
    %p370 = por %p368, %p369
    %p371 = scmp.ne.s32.totalorder %s362, %s363
    %p372 = scmp.eq.s32.totalorder %s36, 0
    %p373 = por %p371, %p372
    %p374 = scmp.ne.s32.totalorder %s362, %s363
    %p375 = scmp.eq.s32.totalorder %s37, 1
    %p376 = por %p374, %p375
    %p378 = scmp.ne.s32.totalorder %s363, %s377
    %p379 = scmp.eq.s32.totalorder %s37, 0
    %p380 = por %p378, %p379
    %s382 = sadd.s32 %s381, 1
    %p385 = scmp.eq.s32.totalorder %s31, 1
    %p386 = scmp.ne.s32.totalorder %s381, %s383
    %p387 = scmp.eq.s32.totalorder %s31, 0
    %p388 = por %p386, %p387
    %p389 = scmp.ne.s32.totalorder %s381, %s383
    %p390 = scmp.eq.s32.totalorder %s36, 1
    %p391 = por %p389, %p390
    %p392 = scmp.ne.s32.totalorder %s383, %s384
    %p393 = scmp.eq.s32.totalorder %s36, 0
    %p394 = por %p392, %p393
    %p395 = scmp.ne.s32.totalorder %s383, %s384
    %p396 = scmp.eq.s32.totalorder %s37, 1
    %p397 = por %p395, %p396
    %p399 = scmp.ne.s32.totalorder %s384, %s398
    %p400 = scmp.eq.s32.totalorder %s37, 0
    %p401 = por %p399, %p400
    %s402 = ssub.s32 %s31, %s38
    %p403 = scmp.eq.s32.totalorder %s402, 0
    %s405 = sadd.s32 %s404, 1
    %s406 = scalar_select %p403, %s404, %s405
    %p409 = pneg %p403
    %p410 = scmp.eq.s32.totalorder %s31, 1
    %p411 = por %p409, %p410
    %p412 = scmp.ne.s32.totalorder %s404, %s407
    %p413 = scmp.eq.s32.totalorder %s31, 0
    %p414 = por %p412, %p413
    %p415 = scmp.ne.s32.totalorder %s404, %s407
    %p416 = scmp.eq.s32.totalorder %s36, 1
    %p417 = por %p415, %p416
    %p418 = scmp.ne.s32.totalorder %s407, %s408
    %p419 = scmp.eq.s32.totalorder %s36, 0
    %p420 = por %p418, %p419
    %p421 = scmp.ne.s32.totalorder %s407, %s408
    %p422 = scmp.eq.s32.totalorder %s37, 1
    %p423 = por %p421, %p422
    %p425 = scmp.ne.s32.totalorder %s408, %s424
    %p426 = scmp.eq.s32.totalorder %s37, 0
    %p427 = por %p425, %p426
    %s428 = ssub.s32 %s31, %s38
    %p429 = scmp.eq.s32.totalorder %s428, 0
    %s431 = sadd.s32 %s430, 1
    %s432 = scalar_select %p429, %s430, %s431
    %p435 = pneg %p429
    %p436 = scmp.eq.s32.totalorder %s31, 1
    %p437 = por %p435, %p436
    %p438 = scmp.ne.s32.totalorder %s430, %s433
    %p439 = scmp.eq.s32.totalorder %s31, 0
    %p440 = por %p438, %p439
    %p441 = scmp.ne.s32.totalorder %s430, %s433
    %p442 = scmp.eq.s32.totalorder %s36, 1
    %p443 = por %p441, %p442
    %p444 = scmp.ne.s32.totalorder %s433, %s434
    %p445 = scmp.eq.s32.totalorder %s36, 0
    %p446 = por %p444, %p445
    %p447 = scmp.ne.s32.totalorder %s433, %s434
    %p448 = scmp.eq.s32.totalorder %s37, 1
    %p449 = por %p447, %p448
    %p451 = scmp.ne.s32.totalorder %s434, %s450
    %p452 = scmp.eq.s32.totalorder %s37, 0
    %p453 = por %p451, %p452
    %p454 = scmp.le.s32.totalorder 1, %s31
    %p455 = scmp.lt.s32.totalorder %s31, 3
    %p456 = pnand %p454, %p455
    %p457 = pneg %p456
    // Predicated region
    $region9: #{docre_forward.1} parent=5 // pred_check
      _
    $region10: #{docre_forward.1} parent=5 // pred_check_branch
      %459 = sbr.rel (%p456) target = $region12
    $region11: #{docre_forward.1} parent=5 // pred_region
      %s460 = ssub.s32 %s31, 1
      // Predicated region
      $region13: #{docre_forward.1} parent=11 // pred_check
        %p461 = pneg %p184
      $region14: #{docre_forward.1} parent=11 // pred_check_branch
        %463 = sbr.rel (%p461) target = $region16
      $region15: #{docre_forward.1} parent=11 // pred_region
        _
      $region16: #{docre_forward.1} parent=11 // pred_fallthru
        _
      // Predicated region
      $region17: #{docre_forward.1} parent=11 // pred_check
        %p464 = pneg %p205
      $region18: #{docre_forward.1} parent=11 // pred_check_branch
        %466 = sbr.rel (%p464) target = $region20
      $region19: #{docre_forward.1} parent=11 // pred_region
        _
      $region20: #{docre_forward.1} parent=11 // pred_fallthru
        _
      // Predicated region
      $region21: #{docre_forward.1} parent=11 // pred_check
        %p467 = pneg %p226
      $region22: #{docre_forward.1} parent=11 // pred_check_branch
        %469 = sbr.rel (%p467) target = $region24
      $region23: #{docre_forward.1} parent=11 // pred_region
        _
      $region24: #{docre_forward.1} parent=11 // pred_fallthru
        _
      // Predicated region
      $region25: #{docre_forward.1} parent=11 // pred_check
        %p470 = pneg %p247
      $region26: #{docre_forward.1} parent=11 // pred_check_branch
        %472 = sbr.rel (%p470) target = $region28
      $region27: #{docre_forward.1} parent=11 // pred_region
        _
      $region28: #{docre_forward.1} parent=11 // pred_fallthru
        _
      // Predicated region
      $region29: #{docre_forward.1} parent=11 // pred_check
        %p473 = pneg %p268
      $region30: #{docre_forward.1} parent=11 // pred_check_branch
        %475 = sbr.rel (%p473) target = $region32
      $region31: #{docre_forward.1} parent=11 // pred_region
        _
      $region32: #{docre_forward.1} parent=11 // pred_fallthru
        _
      // Predicated region
      $region33: #{docre_forward.1} parent=11 // pred_check
        %p476 = pneg %p289
      $region34: #{docre_forward.1} parent=11 // pred_check_branch
        %478 = sbr.rel (%p476) target = $region36
      $region35: #{docre_forward.1} parent=11 // pred_region
        _
      $region36: #{docre_forward.1} parent=11 // pred_fallthru
        _
      // Predicated region
      $region37: #{docre_forward.1} parent=11 // pred_check
        %p479 = pneg %p310
      $region38: #{docre_forward.1} parent=11 // pred_check_branch
        %481 = sbr.rel (%p479) target = $region40
      $region39: #{docre_forward.1} parent=11 // pred_region
        _
      $region40: #{docre_forward.1} parent=11 // pred_fallthru
        _
      // Predicated region
      $region41: #{docre_forward.1} parent=11 // pred_check
        %p482 = pneg %p331
      $region42: #{docre_forward.1} parent=11 // pred_check_branch
        %484 = sbr.rel (%p482) target = $region44
      $region43: #{docre_forward.1} parent=11 // pred_region
        _
      $region44: #{docre_forward.1} parent=11 // pred_fallthru
        _
      // Predicated region
      $region45: #{docre_forward.1} parent=11 // pred_check
        %p485 = pneg %p352
      $region46: #{docre_forward.1} parent=11 // pred_check_branch
        %487 = sbr.rel (%p485) target = $region48
      $region47: #{docre_forward.1} parent=11 // pred_region
        _
      $region48: #{docre_forward.1} parent=11 // pred_fallthru
        _
      // Predicated region
      $region49: #{docre_forward.1} parent=11 // pred_check
        %p488 = pneg %p373
      $region50: #{docre_forward.1} parent=11 // pred_check_branch
        %490 = sbr.rel (%p488) target = $region52
      $region51: #{docre_forward.1} parent=11 // pred_region
        _
      $region52: #{docre_forward.1} parent=11 // pred_fallthru
        _
      // Predicated region
      $region53: #{docre_forward.1} parent=11 // pred_check
        %p491 = pneg %p394
      $region54: #{docre_forward.1} parent=11 // pred_check_branch
        %493 = sbr.rel (%p491) target = $region56
      $region55: #{docre_forward.1} parent=11 // pred_region
        _
      $region56: #{docre_forward.1} parent=11 // pred_fallthru
        _
    $region12: #{docre_forward.1} parent=5 // pred_fallthru
      _
    %p494 = scmp.lt.s32.totalorder %s31, 2
    // Predicated region
    $region57: #{docre_forward.1} parent=5 // pred_check
      %p495 = pneg %p494
    $region58: #{docre_forward.1} parent=5 // pred_check_branch
      %497 = sbr.rel (%p495) target = $region60
    $region59: #{docre_forward.1} parent=5 // pred_region
      // Predicated region
      $region61: #{docre_forward.1} parent=59 // pred_check
        %p498 = pneg %p51
      $region62: #{docre_forward.1} parent=59 // pred_check_branch
        %500 = sbr.rel (%p498) target = $region64
      $region63: #{docre_forward.1} parent=59 // pred_region
        %p501 = scmp.lt.s32.totalorder %s31, 1
        %s502 = scalar_select %p501, %s31, 1
        %s503 = smul.addr %s502, 8
        %s504 = scalar_lea.vmem %s1, %s503
      $region64: #{docre_forward.1} parent=59 // pred_fallthru
        _
      // Predicated region
      $region65: #{docre_forward.1} parent=59 // pred_check
        %p505 = pneg %p77
      $region66: #{docre_forward.1} parent=59 // pred_check_branch
        %507 = sbr.rel (%p505) target = $region68
      $region67: #{docre_forward.1} parent=59 // pred_region
        %p508 = scmp.lt.s32.totalorder %s31, 1
        %s509 = scalar_select %p508, %s31, 1
        %s510 = smul.addr %s509, 8
        %s511 = scalar_lea.vmem %s2, %s510
      $region68: #{docre_forward.1} parent=59 // pred_fallthru
        _
      // Predicated region
      $region69: #{docre_forward.1} parent=59 // pred_check
        %p512 = pneg %p103
      $region70: #{docre_forward.1} parent=59 // pred_check_branch
        %514 = sbr.rel (%p512) target = $region72
      $region71: #{docre_forward.1} parent=59 // pred_region
        %p515 = scmp.lt.s32.totalorder %s31, 1
        %s516 = scalar_select %p515, %s31, 1
        %s517 = smul.addr %s516, 8
        %s518 = scalar_lea.vmem %s3, %s517
      $region72: #{docre_forward.1} parent=59 // pred_fallthru
        _
      // Predicated region
      $region73: #{docre_forward.1} parent=59 // pred_check
        %p519 = pneg %p129
      $region74: #{docre_forward.1} parent=59 // pred_check_branch
        %521 = sbr.rel (%p519) target = $region76
      $region75: #{docre_forward.1} parent=59 // pred_region
        %p522 = scmp.lt.s32.totalorder %s31, 1
        %s523 = scalar_select %p522, %s31, 1
        %s524 = smul.addr %s523, 8
        %s525 = scalar_lea.vmem %s4, %s524
      $region76: #{docre_forward.1} parent=59 // pred_fallthru
        _
      // Predicated region
      $region77: #{docre_forward.1} parent=59 // pred_check
        %p526 = pneg %p157
      $region78: #{docre_forward.1} parent=59 // pred_check_branch
        %528 = sbr.rel (%p526) target = $region80
      $region79: #{docre_forward.1} parent=59 // pred_region
        %s529 = sld [smem:[#allocation3 + %s31]]
        %p530 = scmp.lt.s32.totalorder %s529, 1
        %s531 = scalar_select %p530, %s529, 1
        %s532 = smul.addr %s531, 2
        %s533 = smul.addr %s532, 8
        %s534 = scalar_lea.vmem %s5, %s533
        %s535 = sld [smem:[#allocation3 + %s31]]
      $region80: #{docre_forward.1} parent=59 // pred_fallthru
        _
    $region60: #{docre_forward.1} parent=5 // pred_fallthru
      _
    %p536 = scmp.le.s32.totalorder 1, %s31
    %p537 = scmp.lt.s32.totalorder %s31, 3
    %p538 = pnand %p536, %p537
    %p539 = pneg %p538
    // Predicated region
    $region81: #{docre_forward.1} parent=5 // pred_check
      _
    $region82: #{docre_forward.1} parent=5 // pred_check_branch
      %541 = sbr.rel (%p538) target = $region84
    $region83: #{docre_forward.1} parent=5 // pred_region
      %s542 = ssub.s32 %s31, 1
      %p543 = scmp.lt.s32.totalorder %s36, 1
      %s544 = scalar_select %p543, %s36, 1
      %s545 = smul.addr %s544, 8
      %s546 = scalar_lea.vmem %s1, %s545
      %p547 = pneg %p57
      %p548 = pneg %p54
      %p549 = scmp.lt.s32.totalorder %s36, 1
      %s550 = scalar_select %p549, %s36, 1
      %s551 = smul.addr %s550, 8
      %s552 = scalar_lea.vmem %s2, %s551
      %p553 = pneg %p83
      %p554 = pneg %p80
      %p555 = scmp.lt.s32.totalorder %s36, 1
      %s556 = scalar_select %p555, %s36, 1
      %s557 = smul.addr %s556, 8
      %s558 = scalar_lea.vmem %s3, %s557
      %p559 = pneg %p109
      %p560 = pneg %p106
      %p561 = scmp.lt.s32.totalorder %s36, 1
      %s562 = scalar_select %p561, %s36, 1
      %s563 = smul.addr %s562, 8
      %s564 = scalar_lea.vmem %s4, %s563
      %p565 = pneg %p135
      %p566 = pneg %p132
      %s567 = sld [smem:[#allocation3 + %s36]]
      %p568 = scmp.lt.s32.totalorder %s567, 1
      %s569 = scalar_select %p568, %s567, 1
      %s570 = smul.addr %s569, 2
      %s571 = smul.addr %s570, 8
      %s572 = scalar_lea.vmem %s5, %s571
      %p573 = pneg %p163
      %p574 = pneg %p160
      %p575 = pneg %p184
      %p576 = pneg %p181
      %p577 = pneg %p205
      %p578 = pneg %p202
      %p579 = pneg %p226
      %p580 = pneg %p223
      %p581 = pneg %p247
      %p582 = pneg %p244
      %p583 = pneg %p268
      %p584 = pneg %p265
      %p585 = pneg %p289
      %p586 = pneg %p286
      %p587 = pneg %p310
      %p588 = pneg %p307
      %p589 = pneg %p331
      %p590 = pneg %p328
      %p591 = pneg %p352
      %p592 = pneg %p349
      %p593 = pneg %p373
      %p594 = pneg %p370
      %p595 = pneg %p394
      %p596 = pneg %p391
      %p597 = pneg %p420
      %p598 = pneg %p417
      %p599 = scmp.lt.s32.totalorder %s36, 1
      %s600 = scalar_select %p599, %s36, 1
      %s601 = smul.addr %s600, 8
      %s602 = scalar_lea.vmem %s17, %s601
      %p603 = pneg %p446
      %p604 = pneg %p443
      %p605 = scmp.lt.s32.totalorder %s36, 1
      %s606 = scalar_select %p605, %s36, 1
      %s607 = smul.addr %s606, 8
      %s608 = scalar_lea.vmem %s18, %s607
      %p609 = scmp.lt.s32.totalorder %s36, 1
      %s610 = scalar_select %p609, %s36, 1
      %s611 = smul.addr %s610, 8
      %s612 = scalar_lea.vmem %s1, %s611
      %p613 = scmp.lt.s32.totalorder %s36, 1
      %s614 = scalar_select %p613, %s36, 1
      %s615 = smul.addr %s614, 8
      %s616 = scalar_lea.vmem %s2, %s615
      %p617 = scmp.lt.s32.totalorder %s36, 1
      %s618 = scalar_select %p617, %s36, 1
      %s619 = smul.addr %s618, 8
      %s620 = scalar_lea.vmem %s3, %s619
      %p621 = scmp.lt.s32.totalorder %s36, 1
      %s622 = scalar_select %p621, %s36, 1
      %s623 = smul.addr %s622, 8
      %s624 = scalar_lea.vmem %s4, %s623
      %s625 = sld [smem:[#allocation3 + %s36]]
      %p626 = scmp.lt.s32.totalorder %s625, 1
      %s627 = scalar_select %p626, %s625, 1
      %s628 = smul.addr %s627, 2
      %s629 = smul.addr %s628, 8
      %s630 = scalar_lea.vmem %s5, %s629
      %s631 = sld [smem:[#allocation3 + %s36]]
      %p632 = scmp.lt.s32.totalorder %s36, 1
      %s633 = scalar_select %p632, %s36, 1
      %s634 = smul.addr %s633, 8
      %s635 = scalar_lea.vmem %s17, %s634
      %p636 = scmp.lt.s32.totalorder %s36, 1
      %s637 = scalar_select %p636, %s36, 1
      %s638 = smul.addr %s637, 8
      %s639 = scalar_lea.vmem %s18, %s638
      %v641 = vld [vmem:[%s612] sm:$0xff]
      %v642 = vld [vmem:[%s616] sm:$0xff]
      %v643 = vmul.f32 %v641, %v642
      %v644 = vld [vmem:[%s6] sm:$0xf]
      %v645 = vld [vmem:[%s6 + $0x4] sm:$0xf]
      %v646 = vld [vmem:[%s6 + $0x8] sm:$0xf]
      %v647 = vld [vmem:[%s6 + $0xc] sm:$0xf]
      %v648 = vld [vmem:[%s6 + $0x10] sm:$0xf]
      %v649 = vld [vmem:[%s6 + $0x14] sm:$0xf]
      %v650 = vld [vmem:[%s6 + $0x18] sm:$0xf]
      %v651 = vld [vmem:[%s6 + $0x1c] sm:$0xf]
      %v652 = vpack.c.bf16 %v643, %v643
      %v661 = vunpack.c.l.b16 %v644
      %v662 = vunpack.c.l.b16 %v645
      %v663 = vunpack.c.l.b16 %v646
      %v664 = vunpack.c.l.b16 %v647
      %v665 = vunpack.c.l.b16 %v648
      %v666 = vunpack.c.l.b16 %v649
      %v667 = vunpack.c.l.b16 %v650
      %v668 = vunpack.c.l.b16 %v651
      %v669 = vpack.c.b16 %v662, %v661
      %v670 = vpack.c.b16 %v664, %v663
      %v671 = vpack.c.b16 %v666, %v665
      %v672 = vpack.c.b16 %v668, %v667
      %vm677 = vcmask 523264
      %v679 = vsel %vm677, %v652, 0
      %681 = vmatprep.subr.bf16.mxu0 0
      %682 = vmatpush1.bf16.msra.mxu0 %v669
      %683 = vmatprep.subr.bf16.mxu0 0
      %684 = vmatpush1.bf16.msra.mxu0 %v670
      %685 = vmatprep.subr.bf16.mxu0 0
      %686 = vmatpush1.bf16.msra.mxu0 %v671
      %687 = vmatprep.subr.bf16.mxu0 0
      %688 = vmatpush1.bf16.msra.mxu0 %v672
      %689 = vmatprep.subr.bf16.mxu0 0
      %690 = vmatpush1.bf16.msra.mxu0 0
      %691 = vmatprep.subr.bf16.mxu0 0
      %692 = vmatpush1.bf16.msra.mxu0 0
      %693 = vmatprep.subr.bf16.mxu0 0
      %694 = vmatpush1.bf16.msra.mxu0 0
      %695 = vmatprep.subr.bf16.mxu0 0
      %696 = vmatpush1.bf16.msra.mxu0 0
      %697 = vmatprep.subr.bf16.mxu0 0
      %698 = vmatpush1.bf16.msra.mxu0 0
      %699 = vmatprep.subr.bf16.mxu0 0
      %700 = vmatpush1.bf16.msra.mxu0 0
      %701 = vmatprep.subr.bf16.mxu0 0
      %702 = vmatpush1.bf16.msra.mxu0 0
      %703 = vmatprep.subr.bf16.mxu0 0
      %704 = vmatpush1.bf16.msra.mxu0 0
      %705 = vmatprep.subr.bf16.mxu0 0
      %706 = vmatpush1.bf16.msra.mxu0 0
      %707 = vmatprep.subr.bf16.mxu0 0
      %708 = vmatpush1.bf16.msra.mxu0 0
      %709 = vmatprep.subr.bf16.mxu0 0
      %710 = vmatpush1.bf16.msra.mxu0 0
      %711 = vmatprep.subr.bf16.mxu0 0
      %712 = vmatpush1.bf16.msra.mxu0 0
      %713 = vmatprep.mubr.bf16.mxu0 0
      %714 = vmatmul.mubr.bf16.gmra.mrb[0].mxu0 %v679
      %v715 = vpop.f32.mrb[0].mxu0
      %v716 = vadd.f32 0.0, %v715
      %v717 = vpop.f32.mrb[0].mxu0
      %v718 = vpop.f32.mrb[0].mxu0
      %v719 = vpop.f32.mrb[0].mxu0
      %720 = vdwg.mxu0
      %vm721 = vcmask 130048
      %v722 = vsel %vm721, %v716, 0.0
      %723 = vadd.xlane.f32.xlu0 %v722
      %v724 = vpop.xlane.xlu0 %723
      %v725 = vadd.f32 %v724, 1e-05
      %v726 = vrcp.pop %v725
      %v727 = vmul.f32 %v716, %v726
      %v728 = vld [vmem:[%s630] sm:$0xff]
      %v729 = vld [vmem:[%s630 + $0x8] sm:$0xff]
      %v730 = vpack.c.bf16 %v727, %v727
      %v731 = vpack.c.bf16 %v729, %v728
      %v733 = vsel %vm721, %v730, 0
      %735 = vmatprep.subr.bf16.mxu0 0
      %736 = vmatpush1.bf16.msra.mxu0 %v731
      %737 = vmatprep.subr.bf16.mxu0 0
      %738 = vmatpush1.bf16.msra.mxu0 0
      %739 = vmatprep.subr.bf16.mxu0 0
      %740 = vmatpush1.bf16.msra.mxu0 0
      %741 = vmatprep.subr.bf16.mxu0 0
      %742 = vmatpush1.bf16.msra.mxu0 0
      %743 = vmatprep.subr.bf16.mxu0 0
      %744 = vmatpush1.bf16.msra.mxu0 0
      %745 = vmatprep.subr.bf16.mxu0 0
      %746 = vmatpush1.bf16.msra.mxu0 0
      %747 = vmatprep.subr.bf16.mxu0 0
      %748 = vmatpush1.bf16.msra.mxu0 0
      %749 = vmatprep.subr.bf16.mxu0 0
      %750 = vmatpush1.bf16.msra.mxu0 0
      %751 = vmatprep.subr.bf16.mxu0 0
      %752 = vmatpush1.bf16.msra.mxu0 0
      %753 = vmatprep.subr.bf16.mxu0 0
      %754 = vmatpush1.bf16.msra.mxu0 0
      %755 = vmatprep.subr.bf16.mxu0 0
      %756 = vmatpush1.bf16.msra.mxu0 0
      %757 = vmatprep.subr.bf16.mxu0 0
      %758 = vmatpush1.bf16.msra.mxu0 0
      %759 = vmatprep.subr.bf16.mxu0 0
      %760 = vmatpush1.bf16.msra.mxu0 0
      %761 = vmatprep.subr.bf16.mxu0 0
      %762 = vmatpush1.bf16.msra.mxu0 0
      %763 = vmatprep.subr.bf16.mxu0 0
      %764 = vmatpush1.bf16.msra.mxu0 0
      %765 = vmatprep.subr.bf16.mxu0 0
      %766 = vmatpush1.bf16.msra.mxu0 0
      %767 = vmatprep.mubr.bf16.mxu0 0
      %768 = vmatmul.mubr.bf16.gmra.mrb[0].mxu0 %v733
      %v769 = vpop.f32.mrb[0].mxu0
      %v770 = vadd.f32 0.0, %v769
      %v771 = vpop.f32.mrb[0].mxu0
      %v772 = vpop.f32.mrb[0].mxu0
      %v773 = vpop.f32.mrb[0].mxu0
      %774 = vdwg.mxu0
      %v775 = vld [vmem:[%s620] sm:$0xff]
      %v776 = vld [vmem:[%s7] sm:$0xf]
      %v777 = vld [vmem:[%s7 + $0x4] sm:$0xf]
      %v778 = vld [vmem:[%s7 + $0x8] sm:$0xf]
      %v779 = vld [vmem:[%s7 + $0xc] sm:$0xf]
      %v780 = vpack.c.bf16 %v775, %v775
      %v781 = vld [vmem:[%s8] sm:$0xf]
      %v782 = vld [vmem:[%s8 + $0x4] sm:$0xf]
      %v783 = vld [vmem:[%s8 + $0x8] sm:$0xf]
      %v784 = vld [vmem:[%s8 + $0xc] sm:$0xf]
      %v785 = vpack.c.bf16 %v770, %v770
      %v790 = vunpack.c.l.b16 %v781
      %v791 = vunpack.c.l.b16 %v782
      %v792 = vunpack.c.l.b16 %v783
      %v793 = vunpack.c.l.b16 %v784
      %v794 = vpack.c.b16 %v791, %v790
      %v795 = vpack.c.b16 %v793, %v792
      %vm798 = vcmask 261120
      %v800 = vsel %vm798, %v785, 0
      %802 = vmatprep.subr.bf16.mxu0 0
      %803 = vmatpush1.bf16.msra.mxu0 %v794
      %804 = vmatprep.subr.bf16.mxu0 0
      %805 = vmatpush1.bf16.msra.mxu0 %v795
      %806 = vmatprep.subr.bf16.mxu0 0
      %807 = vmatpush1.bf16.msra.mxu0 0
      %808 = vmatprep.subr.bf16.mxu0 0
      %809 = vmatpush1.bf16.msra.mxu0 0
      %810 = vmatprep.subr.bf16.mxu0 0
      %811 = vmatpush1.bf16.msra.mxu0 0
      %812 = vmatprep.subr.bf16.mxu0 0
      %813 = vmatpush1.bf16.msra.mxu0 0
      %814 = vmatprep.subr.bf16.mxu0 0
      %815 = vmatpush1.bf16.msra.mxu0 0
      %816 = vmatprep.subr.bf16.mxu0 0
      %817 = vmatpush1.bf16.msra.mxu0 0
      %818 = vmatprep.subr.bf16.mxu0 0
      %819 = vmatpush1.bf16.msra.mxu0 0
      %820 = vmatprep.subr.bf16.mxu0 0
      %821 = vmatpush1.bf16.msra.mxu0 0
      %822 = vmatprep.subr.bf16.mxu0 0
      %823 = vmatpush1.bf16.msra.mxu0 0
      %824 = vmatprep.subr.bf16.mxu0 0
      %825 = vmatpush1.bf16.msra.mxu0 0
      %826 = vmatprep.subr.bf16.mxu0 0
      %827 = vmatpush1.bf16.msra.mxu0 0
      %828 = vmatprep.subr.bf16.mxu0 0
      %829 = vmatpush1.bf16.msra.mxu0 0
      %830 = vmatprep.subr.bf16.mxu0 0
      %831 = vmatpush1.bf16.msra.mxu0 0
      %832 = vmatprep.subr.bf16.mxu0 0
      %833 = vmatpush1.bf16.msra.mxu0 0
      %834 = vmatprep.mubr.bf16.mxu0 0
      %835 = vmatmul.mubr.bf16.gmra.mrb[0].mxu0 %v800
      %v836 = vpop.f32.mrb[0].mxu0
      %v837 = vadd.f32 0.0, %v836
      %v838 = vpop.f32.mrb[0].mxu0
      %v839 = vpop.f32.mrb[0].mxu0
      %v840 = vpop.f32.mrb[0].mxu0
      %841 = vdwg.mxu0
      %v846 = vunpack.c.l.b16 %v776
      %v847 = vunpack.c.l.b16 %v777
      %v848 = vunpack.c.l.b16 %v778
      %v849 = vunpack.c.l.b16 %v779
      %v850 = vpack.c.b16 %v847, %v846
      %v851 = vpack.c.b16 %v849, %v848
      %v855 = vsel %vm798, %v780, 0
      %857 = vmatprep.subr.bf16.mxu0 0
      %858 = vmatpush1.bf16.msra.mxu0 %v850
      %859 = vmatprep.subr.bf16.mxu0 0
      %860 = vmatpush1.bf16.msra.mxu0 %v851
      %861 = vmatprep.subr.bf16.mxu0 0
      %862 = vmatpush1.bf16.msra.mxu0 0
      %863 = vmatprep.subr.bf16.mxu0 0
      %864 = vmatpush1.bf16.msra.mxu0 0
      %865 = vmatprep.subr.bf16.mxu0 0
      %866 = vmatpush1.bf16.msra.mxu0 0
      %867 = vmatprep.subr.bf16.mxu0 0
      %868 = vmatpush1.bf16.msra.mxu0 0
      %869 = vmatprep.subr.bf16.mxu0 0
      %870 = vmatpush1.bf16.msra.mxu0 0
      %871 = vmatprep.subr.bf16.mxu0 0
      %872 = vmatpush1.bf16.msra.mxu0 0
      %873 = vmatprep.subr.bf16.mxu0 0
      %874 = vmatpush1.bf16.msra.mxu0 0
      %875 = vmatprep.subr.bf16.mxu0 0
      %876 = vmatpush1.bf16.msra.mxu0 0
      %877 = vmatprep.subr.bf16.mxu0 0
      %878 = vmatpush1.bf16.msra.mxu0 0
      %879 = vmatprep.subr.bf16.mxu0 0
      %880 = vmatpush1.bf16.msra.mxu0 0
      %881 = vmatprep.subr.bf16.mxu0 0
      %882 = vmatpush1.bf16.msra.mxu0 0
      %883 = vmatprep.subr.bf16.mxu0 0
      %884 = vmatpush1.bf16.msra.mxu0 0
      %885 = vmatprep.subr.bf16.mxu0 0
      %886 = vmatpush1.bf16.msra.mxu0 0
      %887 = vmatprep.subr.bf16.mxu0 0
      %888 = vmatpush1.bf16.msra.mxu0 0
      %889 = vmatprep.mubr.bf16.mxu0 0
      %890 = vmatmul.mubr.bf16.gmra.mrb[0].mxu0 %v855
      %v891 = vpop.f32.mrb[0].mxu0
      %v892 = vadd.f32 %v837, %v891
      %v893 = vpop.f32.mrb[0].mxu0
      %v894 = vpop.f32.mrb[0].mxu0
      %v895 = vpop.f32.mrb[0].mxu0
      %896 = vdwg.mxu0
      %v897 = vld [vmem:[%s9] sm:$0x1]
      %v899 = vlaneseq
      %v900 = vshrl.u32 %v899, 7
      %v901 = vsub.s32 0, %v900
      %v902 = vrot.slane %v897, %v901
      %v904 = vadd.f32 %v892, %v902
      %v905 = vld [vmem:[%s624] sm:$0xff]
      %v906 = vld [vmem:[%s10] sm:$0xf]
      %v907 = vld [vmem:[%s10 + $0x4] sm:$0xf]
      %v908 = vld [vmem:[%s10 + $0x8] sm:$0xf]
      %v909 = vld [vmem:[%s10 + $0xc] sm:$0xf]
      %v910 = vpack.c.bf16 %v905, %v905
      %v911 = vld [vmem:[%s11] sm:$0xf]
      %v912 = vld [vmem:[%s11 + $0x4] sm:$0xf]
      %v913 = vld [vmem:[%s11 + $0x8] sm:$0xf]
      %v914 = vld [vmem:[%s11 + $0xc] sm:$0xf]
      %v919 = vunpack.c.l.b16 %v911
      %v920 = vunpack.c.l.b16 %v912
      %v921 = vunpack.c.l.b16 %v913
      %v922 = vunpack.c.l.b16 %v914
      %v923 = vpack.c.b16 %v920, %v919
      %v924 = vpack.c.b16 %v922, %v921
      %927 = vmatprep.subr.bf16.mxu0 0
      %928 = vmatpush1.bf16.msra.mxu0 %v923
      %929 = vmatprep.subr.bf16.mxu0 0
      %930 = vmatpush1.bf16.msra.mxu0 %v924
      %931 = vmatprep.subr.bf16.mxu0 0
      %932 = vmatpush1.bf16.msra.mxu0 0
      %933 = vmatprep.subr.bf16.mxu0 0
      %934 = vmatpush1.bf16.msra.mxu0 0
      %935 = vmatprep.subr.bf16.mxu0 0
      %936 = vmatpush1.bf16.msra.mxu0 0
      %937 = vmatprep.subr.bf16.mxu0 0
      %938 = vmatpush1.bf16.msra.mxu0 0
      %939 = vmatprep.subr.bf16.mxu0 0
      %940 = vmatpush1.bf16.msra.mxu0 0
      %941 = vmatprep.subr.bf16.mxu0 0
      %942 = vmatpush1.bf16.msra.mxu0 0
      %943 = vmatprep.subr.bf16.mxu0 0
      %944 = vmatpush1.bf16.msra.mxu0 0
      %945 = vmatprep.subr.bf16.mxu0 0
      %946 = vmatpush1.bf16.msra.mxu0 0
      %947 = vmatprep.subr.bf16.mxu0 0
      %948 = vmatpush1.bf16.msra.mxu0 0
      %949 = vmatprep.subr.bf16.mxu0 0
      %950 = vmatpush1.bf16.msra.mxu0 0
      %951 = vmatprep.subr.bf16.mxu0 0
      %952 = vmatpush1.bf16.msra.mxu0 0
      %953 = vmatprep.subr.bf16.mxu0 0
      %954 = vmatpush1.bf16.msra.mxu0 0
      %955 = vmatprep.subr.bf16.mxu0 0
      %956 = vmatpush1.bf16.msra.mxu0 0
      %957 = vmatprep.subr.bf16.mxu0 0
      %958 = vmatpush1.bf16.msra.mxu0 0
      %959 = vmatprep.mubr.bf16.mxu0 0
      %960 = vmatmul.mubr.bf16.gmra.mrb[0].mxu0 %v800
      %v961 = vpop.f32.mrb[0].mxu0
      %v962 = vadd.f32 0.0, %v961
      %v963 = vpop.f32.mrb[0].mxu0
      %v964 = vpop.f32.mrb[0].mxu0
      %v965 = vpop.f32.mrb[0].mxu0
      %966 = vdwg.mxu0
      %v971 = vunpack.c.l.b16 %v906
      %v972 = vunpack.c.l.b16 %v907
      %v973 = vunpack.c.l.b16 %v908
      %v974 = vunpack.c.l.b16 %v909
      %v975 = vpack.c.b16 %v972, %v971
      %v976 = vpack.c.b16 %v974, %v973
      %v980 = vsel %vm798, %v910, 0
      %982 = vmatprep.subr.bf16.mxu0 0
      %983 = vmatpush1.bf16.msra.mxu0 %v975
      %984 = vmatprep.subr.bf16.mxu0 0
      %985 = vmatpush1.bf16.msra.mxu0 %v976
      %986 = vmatprep.subr.bf16.mxu0 0
      %987 = vmatpush1.bf16.msra.mxu0 0
      %988 = vmatprep.subr.bf16.mxu0 0
      %989 = vmatpush1.bf16.msra.mxu0 0
      %990 = vmatprep.subr.bf16.mxu0 0
      %991 = vmatpush1.bf16.msra.mxu0 0
      %992 = vmatprep.subr.bf16.mxu0 0
      %993 = vmatpush1.bf16.msra.mxu0 0
      %994 = vmatprep.subr.bf16.mxu0 0
      %995 = vmatpush1.bf16.msra.mxu0 0
      %996 = vmatprep.subr.bf16.mxu0 0
      %997 = vmatpush1.bf16.msra.mxu0 0
      %998 = vmatprep.subr.bf16.mxu0 0
      %999 = vmatpush1.bf16.msra.mxu0 0
      %1000 = vmatprep.subr.bf16.mxu0 0
      %1001 = vmatpush1.bf16.msra.mxu0 0
      %1002 = vmatprep.subr.bf16.mxu0 0
      %1003 = vmatpush1.bf16.msra.mxu0 0
      %1004 = vmatprep.subr.bf16.mxu0 0
      %1005 = vmatpush1.bf16.msra.mxu0 0
      %1006 = vmatprep.subr.bf16.mxu0 0
      %1007 = vmatpush1.bf16.msra.mxu0 0
      %1008 = vmatprep.subr.bf16.mxu0 0
      %1009 = vmatpush1.bf16.msra.mxu0 0
      %1010 = vmatprep.subr.bf16.mxu0 0
      %1011 = vmatpush1.bf16.msra.mxu0 0
      %1012 = vmatprep.subr.bf16.mxu0 0
      %1013 = vmatpush1.bf16.msra.mxu0 0
      %1014 = vmatprep.mubr.bf16.mxu0 0
      %1015 = vmatmul.mubr.bf16.gmra.mrb[0].mxu0 %v980
      %v1016 = vpop.f32.mrb[0].mxu0
      %v1017 = vadd.f32 %v962, %v1016
      %v1018 = vpop.f32.mrb[0].mxu0
      %v1019 = vpop.f32.mrb[0].mxu0
      %v1020 = vpop.f32.mrb[0].mxu0
      %1021 = vdwg.mxu0
      %v1022 = vld [vmem:[%s12] sm:$0x1]
      %v1024 = vlaneseq
      %v1025 = vshrl.u32 %v1024, 7
      %v1026 = vsub.s32 0, %v1025
      %v1027 = vrot.slane %v1022, %v1026
      %v1029 = vadd.f32 %v1017, %v1027
      %v1030 = vtanh.pop %v904
      %v1031 = vtanh.pop %v1029
      %v1032 = vld [vmem:[%s13] sm:$0xff]
      %v1033 = vld [vmem:[%s13 + $0x8] sm:$0xff]
      %v1034 = vld [vmem:[%s13 + $0x10] sm:$0xff]
      %v1035 = vld [vmem:[%s13 + $0x18] sm:$0xff]
      %v1036 = vld [vmem:[%s13 + $0x20] sm:$0xff]
      %v1037 = vld [vmem:[%s13 + $0x28] sm:$0xff]
      %v1038 = vld [vmem:[%s13 + $0x30] sm:$0xff]
      %v1039 = vld [vmem:[%s13 + $0x38] sm:$0xff]
      %v1040 = vld [vmem:[%s13 + $0x40] sm:$0xff]
      %v1041 = vld [vmem:[%s13 + $0x48] sm:$0xff]
      %v1042 = vld [vmem:[%s13 + $0x50] sm:$0xff]
      %v1043 = vld [vmem:[%s13 + $0x58] sm:$0xff]
      %v1044 = vld [vmem:[%s13 + $0x60] sm:$0xff]
      %v1045 = vld [vmem:[%s13 + $0x68] sm:$0xff]
      %v1046 = vld [vmem:[%s13 + $0x70] sm:$0xff]
      %v1047 = vld [vmem:[%s13 + $0x78] sm:$0xff]
      %v1048 = vld [vmem:[%s13 + $0x80] sm:$0xff]
      %v1049 = vld [vmem:[%s13 + $0x88] sm:$0xff]
      %v1050 = vld [vmem:[%s13 + $0x90] sm:$0xff]
      %v1051 = vld [vmem:[%s13 + $0x98] sm:$0xff]
      %v1052 = vld [vmem:[%s13 + $0xa0] sm:$0xff]
      %v1053 = vld [vmem:[%s13 + $0xa8] sm:$0xff]
      %v1054 = vld [vmem:[%s13 + $0xb0] sm:$0xff]
      %v1055 = vld [vmem:[%s13 + $0xb8] sm:$0xff]
      %v1056 = vld [vmem:[%s13 + $0xc0] sm:$0xff]
      %v1057 = vld [vmem:[%s13 + $0xc8] sm:$0xff]
      %v1058 = vld [vmem:[%s13 + $0xd0] sm:$0xff]
      %v1059 = vld [vmem:[%s13 + $0xd8] sm:$0xff]
      %v1060 = vld [vmem:[%s13 + $0xe0] sm:$0xff]
      %v1061 = vld [vmem:[%s13 + $0xe8] sm:$0xff]
      %v1062 = vld [vmem:[%s13 + $0xf0] sm:$0xff]
      %v1063 = vld [vmem:[%s13 + $0xf8] sm:$0xff]
      %v1064 = vpack.c.bf16 %v1030, %v1030
      %v1097 = vunpack.c.l.b16 %v1032
      %v1098 = vunpack.c.h.b16 %v1032
      %v1099 = vunpack.c.l.b16 %v1033
      %v1100 = vunpack.c.h.b16 %v1033
      %v1101 = vunpack.c.l.b16 %v1034
      %v1102 = vunpack.c.h.b16 %v1034
      %v1103 = vunpack.c.l.b16 %v1035
      %v1104 = vunpack.c.h.b16 %v1035
      %v1105 = vunpack.c.l.b16 %v1036
      %v1106 = vunpack.c.h.b16 %v1036
      %v1107 = vunpack.c.l.b16 %v1037
      %v1108 = vunpack.c.h.b16 %v1037
      %v1109 = vunpack.c.l.b16 %v1038
      %v1110 = vunpack.c.h.b16 %v1038
      %v1111 = vunpack.c.l.b16 %v1039
      %v1112 = vunpack.c.h.b16 %v1039
      %v1113 = vunpack.c.l.b16 %v1040
      %v1114 = vunpack.c.h.b16 %v1040
      %v1115 = vunpack.c.l.b16 %v1041
      %v1116 = vunpack.c.h.b16 %v1041
      %v1117 = vunpack.c.l.b16 %v1042
      %v1118 = vunpack.c.h.b16 %v1042
      %v1119 = vunpack.c.l.b16 %v1043
      %v1120 = vunpack.c.h.b16 %v1043
      %v1121 = vunpack.c.l.b16 %v1044
      %v1122 = vunpack.c.h.b16 %v1044
      %v1123 = vunpack.c.l.b16 %v1045
      %v1124 = vunpack.c.h.b16 %v1045
      %v1125 = vunpack.c.l.b16 %v1046
      %v1126 = vunpack.c.h.b16 %v1046
      %v1127 = vunpack.c.l.b16 %v1047
      %v1128 = vunpack.c.h.b16 %v1047
      %v1129 = vunpack.c.l.b16 %v1048
      %v1130 = vunpack.c.h.b16 %v1048
      %v1131 = vunpack.c.l.b16 %v1049
      %v1132 = vunpack.c.h.b16 %v1049
      %v1133 = vunpack.c.l.b16 %v1050
      %v1134 = vunpack.c.h.b16 %v1050
      %v1135 = vunpack.c.l.b16 %v1051
      %v1136 = vunpack.c.h.b16 %v1051
      %v1137 = vunpack.c.l.b16 %v1052
      %v1138 = vunpack.c.h.b16 %v1052
      %v1139 = vunpack.c.l.b16 %v1053
      %v1140 = vunpack.c.h.b16 %v1053
      %v1141 = vunpack.c.l.b16 %v1054
      %v1142 = vunpack.c.h.b16 %v1054
      %v1143 = vunpack.c.l.b16 %v1055
      %v1144 = vunpack.c.h.b16 %v1055
      %v1145 = vunpack.c.l.b16 %v1056
      %v1146 = vunpack.c.h.b16 %v1056
      %v1147 = vunpack.c.l.b16 %v1057
      %v1148 = vunpack.c.h.b16 %v1057
      %v1149 = vunpack.c.l.b16 %v1058
      %v1150 = vunpack.c.h.b16 %v1058
      %v1151 = vunpack.c.l.b16 %v1059
      %v1152 = vunpack.c.h.b16 %v1059
      %v1153 = vunpack.c.l.b16 %v1060
      %v1154 = vunpack.c.h.b16 %v1060
      %v1155 = vunpack.c.l.b16 %v1061
      %v1156 = vunpack.c.h.b16 %v1061
      %v1157 = vunpack.c.l.b16 %v1062
      %v1158 = vunpack.c.h.b16 %v1062
      %v1159 = vunpack.c.l.b16 %v1063
      %v1160 = vunpack.c.h.b16 %v1063
      %v1161 = vpack.c.b16 %v1105, %v1097
      %v1162 = vpack.c.b16 %v1106, %v1098
      %v1163 = vpack.c.b16 %v1107, %v1099
      %v1164 = vpack.c.b16 %v1108, %v1100
      %v1165 = vpack.c.b16 %v1109, %v1101
      %v1166 = vpack.c.b16 %v1110, %v1102
      %v1167 = vpack.c.b16 %v1111, %v1103
      %v1168 = vpack.c.b16 %v1112, %v1104
      %v1169 = vpack.c.b16 %v1121, %v1113
      %v1170 = vpack.c.b16 %v1122, %v1114
      %v1171 = vpack.c.b16 %v1123, %v1115
      %v1172 = vpack.c.b16 %v1124, %v1116
      %v1173 = vpack.c.b16 %v1125, %v1117
      %v1174 = vpack.c.b16 %v1126, %v1118
      %v1175 = vpack.c.b16 %v1127, %v1119
      %v1176 = vpack.c.b16 %v1128, %v1120
      %v1177 = vpack.c.b16 %v1137, %v1129
      %v1178 = vpack.c.b16 %v1138, %v1130
      %v1179 = vpack.c.b16 %v1139, %v1131
      %v1180 = vpack.c.b16 %v1140, %v1132
      %v1181 = vpack.c.b16 %v1141, %v1133
      %v1182 = vpack.c.b16 %v1142, %v1134
      %v1183 = vpack.c.b16 %v1143, %v1135
      %v1184 = vpack.c.b16 %v1144, %v1136
      %v1185 = vpack.c.b16 %v1153, %v1145
      %v1186 = vpack.c.b16 %v1154, %v1146
      %v1187 = vpack.c.b16 %v1155, %v1147
      %v1188 = vpack.c.b16 %v1156, %v1148
      %v1189 = vpack.c.b16 %v1157, %v1149
      %v1190 = vpack.c.b16 %v1158, %v1150
      %v1191 = vpack.c.b16 %v1159, %v1151
      %v1192 = vpack.c.b16 %v1160, %v1152
      %v1226 = vsel %vm677, %v1064, 0
      %1228 = vmatprep.subr.bf16.mxu0 %v1162
      %1229 = vmatpush1.bf16.msra.mxu0 %v1161
      %1230 = vmatprep.subr.bf16.mxu0 %v1170
      %1231 = vmatpush1.bf16.msra.mxu0 %v1169
      %1232 = vmatprep.subr.bf16.mxu0 %v1178
      %1233 = vmatpush1.bf16.msra.mxu0 %v1177
      %1234 = vmatprep.subr.bf16.mxu0 %v1186
      %1235 = vmatpush1.bf16.msra.mxu0 %v1185
      %1236 = vmatprep.subr.bf16.mxu0 0
      %1237 = vmatpush1.bf16.msra.mxu0 0
      %1238 = vmatprep.subr.bf16.mxu0 0
      %1239 = vmatpush1.bf16.msra.mxu0 0
      %1240 = vmatprep.subr.bf16.mxu0 0
      %1241 = vmatpush1.bf16.msra.mxu0 0
      %1242 = vmatprep.subr.bf16.mxu0 0
      %1243 = vmatpush1.bf16.msra.mxu0 0
      %1244 = vmatprep.subr.bf16.mxu0 0
      %1245 = vmatpush1.bf16.msra.mxu0 0
      %1246 = vmatprep.subr.bf16.mxu0 0
      %1247 = vmatpush1.bf16.msra.mxu0 0
      %1248 = vmatprep.subr.bf16.mxu0 0
      %1249 = vmatpush1.bf16.msra.mxu0 0
      %1250 = vmatprep.subr.bf16.mxu0 0
      %1251 = vmatpush1.bf16.msra.mxu0 0
      %1252 = vmatprep.subr.bf16.mxu0 0
      %1253 = vmatpush1.bf16.msra.mxu0 0
      %1254 = vmatprep.subr.bf16.mxu0 0
      %1255 = vmatpush1.bf16.msra.mxu0 0
      %1256 = vmatprep.subr.bf16.mxu0 0
      %1257 = vmatpush1.bf16.msra.mxu0 0
      %1258 = vmatprep.subr.bf16.mxu0 0
      %1259 = vmatpush1.bf16.msra.mxu0 0
      %1260 = vmatprep.mubr.bf16.mxu0 0
      %1261 = vmatmul.mubr.bf16.gmra.mrb[0].mxu0 %v1226
      %v1262 = vpop.f32.mrb[0].mxu0
      %v1263 = vadd.f32 0.0, %v1262
      %v1264 = vpop.f32.mrb[0].mxu0
      %v1265 = vadd.f32 0.0, %v1264
      %v1266 = vpop.f32.mrb[0].mxu0
      %v1267 = vpop.f32.mrb[0].mxu0
      %1268 = vdwg.mxu0
      %1269 = vmatprep.subr.bf16.mxu0 %v1164
      %1270 = vmatpush1.bf16.msra.mxu0 %v1163
      %1271 = vmatprep.subr.bf16.mxu0 %v1172
      %1272 = vmatpush1.bf16.msra.mxu0 %v1171
      %1273 = vmatprep.subr.bf16.mxu0 %v1180
      %1274 = vmatpush1.bf16.msra.mxu0 %v1179
      %1275 = vmatprep.subr.bf16.mxu0 %v1188
      %1276 = vmatpush1.bf16.msra.mxu0 %v1187
      %1277 = vmatprep.subr.bf16.mxu0 0
      %1278 = vmatpush1.bf16.msra.mxu0 0
      %1279 = vmatprep.subr.bf16.mxu0 0
      %1280 = vmatpush1.bf16.msra.mxu0 0
      %1281 = vmatprep.subr.bf16.mxu0 0
      %1282 = vmatpush1.bf16.msra.mxu0 0
      %1283 = vmatprep.subr.bf16.mxu0 0
      %1284 = vmatpush1.bf16.msra.mxu0 0
      %1285 = vmatprep.subr.bf16.mxu0 0
      %1286 = vmatpush1.bf16.msra.mxu0 0
      %1287 = vmatprep.subr.bf16.mxu0 0
      %1288 = vmatpush1.bf16.msra.mxu0 0
      %1289 = vmatprep.subr.bf16.mxu0 0
      %1290 = vmatpush1.bf16.msra.mxu0 0
      %1291 = vmatprep.subr.bf16.mxu0 0
      %1292 = vmatpush1.bf16.msra.mxu0 0
      %1293 = vmatprep.subr.bf16.mxu0 0
      %1294 = vmatpush1.bf16.msra.mxu0 0
      %1295 = vmatprep.subr.bf16.mxu0 0
      %1296 = vmatpush1.bf16.msra.mxu0 0
      %1297 = vmatprep.subr.bf16.mxu0 0
      %1298 = vmatpush1.bf16.msra.mxu0 0
      %1299 = vmatprep.subr.bf16.mxu0 0
      %1300 = vmatpush1.bf16.msra.mxu0 0
      %1301 = vmatprep.mubr.bf16.mxu0 0
      %1302 = vmatmul.mubr.bf16.gmra.mrb[0].mxu0 %v1226
      %v1303 = vpop.f32.mrb[0].mxu0
      %v1304 = vadd.f32 0.0, %v1303
      %v1305 = vpop.f32.mrb[0].mxu0
      %v1306 = vadd.f32 0.0, %v1305
      %v1307 = vpop.f32.mrb[0].mxu0
      %v1308 = vpop.f32.mrb[0].mxu0
      %1309 = vdwg.mxu0
      %1310 = vmatprep.subr.bf16.mxu0 %v1166
      %1311 = vmatpush1.bf16.msra.mxu0 %v1165
      %1312 = vmatprep.subr.bf16.mxu0 %v1174
      %1313 = vmatpush1.bf16.msra.mxu0 %v1173
      %1314 = vmatprep.subr.bf16.mxu0 %v1182
      %1315 = vmatpush1.bf16.msra.mxu0 %v1181
      %1316 = vmatprep.subr.bf16.mxu0 %v1190
      %1317 = vmatpush1.bf16.msra.mxu0 %v1189
      %1318 = vmatprep.subr.bf16.mxu0 0
      %1319 = vmatpush1.bf16.msra.mxu0 0
      %1320 = vmatprep.subr.bf16.mxu0 0
      %1321 = vmatpush1.bf16.msra.mxu0 0
      %1322 = vmatprep.subr.bf16.mxu0 0
      %1323 = vmatpush1.bf16.msra.mxu0 0
      %1324 = vmatprep.subr.bf16.mxu0 0
      %1325 = vmatpush1.bf16.msra.mxu0 0
      %1326 = vmatprep.subr.bf16.mxu0 0
      %1327 = vmatpush1.bf16.msra.mxu0 0
      %1328 = vmatprep.subr.bf16.mxu0 0
      %1329 = vmatpush1.bf16.msra.mxu0 0
      %1330 = vmatprep.subr.bf16.mxu0 0
      %1331 = vmatpush1.bf16.msra.mxu0 0
      %1332 = vmatprep.subr.bf16.mxu0 0
      %1333 = vmatpush1.bf16.msra.mxu0 0
      %1334 = vmatprep.subr.bf16.mxu0 0
      %1335 = vmatpush1.bf16.msra.mxu0 0
      %1336 = vmatprep.subr.bf16.mxu0 0
      %1337 = vmatpush1.bf16.msra.mxu0 0
      %1338 = vmatprep.subr.bf16.mxu0 0
      %1339 = vmatpush1.bf16.msra.mxu0 0
      %1340 = vmatprep.subr.bf16.mxu0 0
      %1341 = vmatpush1.bf16.msra.mxu0 0
      %1342 = vmatprep.mubr.bf16.mxu0 0
      %1343 = vmatmul.mubr.bf16.gmra.mrb[0].mxu0 %v1226
      %v1344 = vpop.f32.mrb[0].mxu0
      %v1345 = vadd.f32 0.0, %v1344
      %v1346 = vpop.f32.mrb[0].mxu0
      %v1347 = vadd.f32 0.0, %v1346
      %v1348 = vpop.f32.mrb[0].mxu0
      %v1349 = vpop.f32.mrb[0].mxu0
      %1350 = vdwg.mxu0
      %1351 = vmatprep.subr.bf16.mxu0 %v1168
      %1352 = vmatpush1.bf16.msra.mxu0 %v1167
      %1353 = vmatprep.subr.bf16.mxu0 %v1176
      %1354 = vmatpush1.bf16.msra.mxu0 %v1175
      %1355 = vmatprep.subr.bf16.mxu0 %v1184
      %1356 = vmatpush1.bf16.msra.mxu0 %v1183
      %1357 = vmatprep.subr.bf16.mxu0 %v1192
      %1358 = vmatpush1.bf16.msra.mxu0 %v1191
      %1359 = vmatprep.subr.bf16.mxu0 0
      %1360 = vmatpush1.bf16.msra.mxu0 0
      %1361 = vmatprep.subr.bf16.mxu0 0
      %1362 = vmatpush1.bf16.msra.mxu0 0
      %1363 = vmatprep.subr.bf16.mxu0 0
      %1364 = vmatpush1.bf16.msra.mxu0 0
      %1365 = vmatprep.subr.bf16.mxu0 0
      %1366 = vmatpush1.bf16.msra.mxu0 0
      %1367 = vmatprep.subr.bf16.mxu0 0
      %1368 = vmatpush1.bf16.msra.mxu0 0
      %1369 = vmatprep.subr.bf16.mxu0 0
      %1370 = vmatpush1.bf16.msra.mxu0 0
      %1371 = vmatprep.subr.bf16.mxu0 0
      %1372 = vmatpush1.bf16.msra.mxu0 0
      %1373 = vmatprep.subr.bf16.mxu0 0
      %1374 = vmatpush1.bf16.msra.mxu0 0
      %1375 = vmatprep.subr.bf16.mxu0 0
      %1376 = vmatpush1.bf16.msra.mxu0 0
      %1377 = vmatprep.subr.bf16.mxu0 0
      %1378 = vmatpush1.bf16.msra.mxu0 0
      %1379 = vmatprep.subr.bf16.mxu0 0
      %1380 = vmatpush1.bf16.msra.mxu0 0
      %1381 = vmatprep.subr.bf16.mxu0 0
      %1382 = vmatpush1.bf16.msra.mxu0 0
      %1383 = vmatprep.mubr.bf16.mxu0 0
      %1384 = vmatmul.mubr.bf16.gmra.mrb[0].mxu0 %v1226
      %v1385 = vpop.f32.mrb[0].mxu0
      %v1386 = vadd.f32 0.0, %v1385
      %v1387 = vpop.f32.mrb[0].mxu0
      %v1388 = vadd.f32 0.0, %v1387
      %v1389 = vpop.f32.mrb[0].mxu0
      %v1390 = vpop.f32.mrb[0].mxu0
      %1391 = vdwg.mxu0
      %v1392 = vld [vmem:[%s14] sm:$0xff]
      %v1393 = vld [vmem:[%s14 + $0x8] sm:$0xff]
      %v1394 = vld [vmem:[%s14 + $0x10] sm:$0xff]
      %v1395 = vld [vmem:[%s14 + $0x18] sm:$0xff]
      %v1396 = vld [vmem:[%s14 + $0x20] sm:$0xff]
      %v1397 = vld [vmem:[%s14 + $0x28] sm:$0xff]
      %v1398 = vld [vmem:[%s14 + $0x30] sm:$0xff]
      %v1399 = vld [vmem:[%s14 + $0x38] sm:$0xff]
      %v1400 = vld [vmem:[%s14 + $0x40] sm:$0xff]
      %v1401 = vld [vmem:[%s14 + $0x48] sm:$0xff]
      %v1402 = vld [vmem:[%s14 + $0x50] sm:$0xff]
      %v1403 = vld [vmem:[%s14 + $0x58] sm:$0xff]
      %v1404 = vld [vmem:[%s14 + $0x60] sm:$0xff]
      %v1405 = vld [vmem:[%s14 + $0x68] sm:$0xff]
      %v1406 = vld [vmem:[%s14 + $0x70] sm:$0xff]
      %v1407 = vld [vmem:[%s14 + $0x78] sm:$0xff]
      %v1408 = vld [vmem:[%s14 + $0x80] sm:$0xff]
      %v1409 = vld [vmem:[%s14 + $0x88] sm:$0xff]
      %v1410 = vld [vmem:[%s14 + $0x90] sm:$0xff]
      %v1411 = vld [vmem:[%s14 + $0x98] sm:$0xff]
      %v1412 = vld [vmem:[%s14 + $0xa0] sm:$0xff]
      %v1413 = vld [vmem:[%s14 + $0xa8] sm:$0xff]
      %v1414 = vld [vmem:[%s14 + $0xb0] sm:$0xff]
      %v1415 = vld [vmem:[%s14 + $0xb8] sm:$0xff]
      %v1416 = vld [vmem:[%s14 + $0xc0] sm:$0xff]
      %v1417 = vld [vmem:[%s14 + $0xc8] sm:$0xff]
      %v1418 = vld [vmem:[%s14 + $0xd0] sm:$0xff]
      %v1419 = vld [vmem:[%s14 + $0xd8] sm:$0xff]
      %v1420 = vld [vmem:[%s14 + $0xe0] sm:$0xff]
      %v1421 = vld [vmem:[%s14 + $0xe8] sm:$0xff]
      %v1422 = vld [vmem:[%s14 + $0xf0] sm:$0xff]
      %v1423 = vld [vmem:[%s14 + $0xf8] sm:$0xff]
      %v1424 = vpack.c.bf16 %v1031, %v1031
      %v1457 = vunpack.c.l.b16 %v1392
      %v1458 = vunpack.c.h.b16 %v1392
      %v1459 = vunpack.c.l.b16 %v1393
      %v1460 = vunpack.c.h.b16 %v1393
      %v1461 = vunpack.c.l.b16 %v1394
      %v1462 = vunpack.c.h.b16 %v1394
      %v1463 = vunpack.c.l.b16 %v1395
      %v1464 = vunpack.c.h.b16 %v1395
      %v1465 = vunpack.c.l.b16 %v1396
      %v1466 = vunpack.c.h.b16 %v1396
      %v1467 = vunpack.c.l.b16 %v1397
      %v1468 = vunpack.c.h.b16 %v1397
      %v1469 = vunpack.c.l.b16 %v1398
      %v1470 = vunpack.c.h.b16 %v1398
      %v1471 = vunpack.c.l.b16 %v1399
      %v1472 = vunpack.c.h.b16 %v1399
      %v1473 = vunpack.c.l.b16 %v1400
      %v1474 = vunpack.c.h.b16 %v1400
      %v1475 = vunpack.c.l.b16 %v1401
      %v1476 = vunpack.c.h.b16 %v1401
      %v1477 = vunpack.c.l.b16 %v1402
      %v1478 = vunpack.c.h.b16 %v1402
      %v1479 = vunpack.c.l.b16 %v1403
      %v1480 = vunpack.c.h.b16 %v1403
      %v1481 = vunpack.c.l.b16 %v1404
      %v1482 = vunpack.c.h.b16 %v1404
      %v1483 = vunpack.c.l.b16 %v1405
      %v1484 = vunpack.c.h.b16 %v1405
      %v1485 = vunpack.c.l.b16 %v1406
      %v1486 = vunpack.c.h.b16 %v1406
      %v1487 = vunpack.c.l.b16 %v1407
      %v1488 = vunpack.c.h.b16 %v1407
      %v1489 = vunpack.c.l.b16 %v1408
      %v1490 = vunpack.c.h.b16 %v1408
      %v1491 = vunpack.c.l.b16 %v1409
      %v1492 = vunpack.c.h.b16 %v1409
      %v1493 = vunpack.c.l.b16 %v1410
      %v1494 = vunpack.c.h.b16 %v1410
      %v1495 = vunpack.c.l.b16 %v1411
      %v1496 = vunpack.c.h.b16 %v1411
      %v1497 = vunpack.c.l.b16 %v1412
      %v1498 = vunpack.c.h.b16 %v1412
      %v1499 = vunpack.c.l.b16 %v1413
      %v1500 = vunpack.c.h.b16 %v1413
      %v1501 = vunpack.c.l.b16 %v1414
      %v1502 = vunpack.c.h.b16 %v1414
      %v1503 = vunpack.c.l.b16 %v1415
      %v1504 = vunpack.c.h.b16 %v1415
      %v1505 = vunpack.c.l.b16 %v1416
      %v1506 = vunpack.c.h.b16 %v1416
      %v1507 = vunpack.c.l.b16 %v1417
      %v1508 = vunpack.c.h.b16 %v1417
      %v1509 = vunpack.c.l.b16 %v1418
      %v1510 = vunpack.c.h.b16 %v1418
      %v1511 = vunpack.c.l.b16 %v1419
      %v1512 = vunpack.c.h.b16 %v1419
      %v1513 = vunpack.c.l.b16 %v1420
      %v1514 = vunpack.c.h.b16 %v1420
      %v1515 = vunpack.c.l.b16 %v1421
      %v1516 = vunpack.c.h.b16 %v1421
      %v1517 = vunpack.c.l.b16 %v1422
      %v1518 = vunpack.c.h.b16 %v1422
      %v1519 = vunpack.c.l.b16 %v1423
      %v1520 = vunpack.c.h.b16 %v1423
      %v1521 = vpack.c.b16 %v1465, %v1457
      %v1522 = vpack.c.b16 %v1466, %v1458
      %v1523 = vpack.c.b16 %v1467, %v1459
      %v1524 = vpack.c.b16 %v1468, %v1460
      %v1525 = vpack.c.b16 %v1469, %v1461
      %v1526 = vpack.c.b16 %v1470, %v1462
      %v1527 = vpack.c.b16 %v1471, %v1463
      %v1528 = vpack.c.b16 %v1472, %v1464
      %v1529 = vpack.c.b16 %v1481, %v1473
      %v1530 = vpack.c.b16 %v1482, %v1474
      %v1531 = vpack.c.b16 %v1483, %v1475
      %v1532 = vpack.c.b16 %v1484, %v1476
      %v1533 = vpack.c.b16 %v1485, %v1477
      %v1534 = vpack.c.b16 %v1486, %v1478
      %v1535 = vpack.c.b16 %v1487, %v1479
      %v1536 = vpack.c.b16 %v1488, %v1480
      %v1537 = vpack.c.b16 %v1497, %v1489
      %v1538 = vpack.c.b16 %v1498, %v1490
      %v1539 = vpack.c.b16 %v1499, %v1491
      %v1540 = vpack.c.b16 %v1500, %v1492
      %v1541 = vpack.c.b16 %v1501, %v1493
      %v1542 = vpack.c.b16 %v1502, %v1494
      %v1543 = vpack.c.b16 %v1503, %v1495
      %v1544 = vpack.c.b16 %v1504, %v1496
      %v1545 = vpack.c.b16 %v1513, %v1505
      %v1546 = vpack.c.b16 %v1514, %v1506
      %v1547 = vpack.c.b16 %v1515, %v1507
      %v1548 = vpack.c.b16 %v1516, %v1508
      %v1549 = vpack.c.b16 %v1517, %v1509
      %v1550 = vpack.c.b16 %v1518, %v1510
      %v1551 = vpack.c.b16 %v1519, %v1511
      %v1552 = vpack.c.b16 %v1520, %v1512
      %v1586 = vsel %vm677, %v1424, 0
      %1588 = vmatprep.subr.bf16.mxu0 %v1522
      %1589 = vmatpush1.bf16.msra.mxu0 %v1521
      %1590 = vmatprep.subr.bf16.mxu0 %v1530
      %1591 = vmatpush1.bf16.msra.mxu0 %v1529
      %1592 = vmatprep.subr.bf16.mxu0 %v1538
      %1593 = vmatpush1.bf16.msra.mxu0 %v1537
      %1594 = vmatprep.subr.bf16.mxu0 %v1546
      %1595 = vmatpush1.bf16.msra.mxu0 %v1545
      %1596 = vmatprep.subr.bf16.mxu0 0
      %1597 = vmatpush1.bf16.msra.mxu0 0
      %1598 = vmatprep.subr.bf16.mxu0 0
      %1599 = vmatpush1.bf16.msra.mxu0 0
      %1600 = vmatprep.subr.bf16.mxu0 0
      %1601 = vmatpush1.bf16.msra.mxu0 0
      %1602 = vmatprep.subr.bf16.mxu0 0
      %1603 = vmatpush1.bf16.msra.mxu0 0
      %1604 = vmatprep.subr.bf16.mxu0 0
      %1605 = vmatpush1.bf16.msra.mxu0 0
      %1606 = vmatprep.subr.bf16.mxu0 0
      %1607 = vmatpush1.bf16.msra.mxu0 0
      %1608 = vmatprep.subr.bf16.mxu0 0
      %1609 = vmatpush1.bf16.msra.mxu0 0
      %1610 = vmatprep.subr.bf16.mxu0 0
      %1611 = vmatpush1.bf16.msra.mxu0 0
      %1612 = vmatprep.subr.bf16.mxu0 0
      %1613 = vmatpush1.bf16.msra.mxu0 0
      %1614 = vmatprep.subr.bf16.mxu0 0
      %1615 = vmatpush1.bf16.msra.mxu0 0
      %1616 = vmatprep.subr.bf16.mxu0 0
      %1617 = vmatpush1.bf16.msra.mxu0 0
      %1618 = vmatprep.subr.bf16.mxu0 0
      %1619 = vmatpush1.bf16.msra.mxu0 0
      %1620 = vmatprep.mubr.bf16.mxu0 0
      %1621 = vmatmul.mubr.bf16.gmra.mrb[0].mxu0 %v1586
      %v1622 = vpop.f32.mrb[0].mxu0
      %v1623 = vadd.f32 0.0, %v1622
      %v1624 = vpop.f32.mrb[0].mxu0
      %v1625 = vadd.f32 0.0, %v1624
      %v1626 = vpop.f32.mrb[0].mxu0
      %v1627 = vpop.f32.mrb[0].mxu0
      %1628 = vdwg.mxu0
      %1629 = vmatprep.subr.bf16.mxu0 %v1524
      %1630 = vmatpush1.bf16.msra.mxu0 %v1523
      %1631 = vmatprep.subr.bf16.mxu0 %v1532
      %1632 = vmatpush1.bf16.msra.mxu0 %v1531
      %1633 = vmatprep.subr.bf16.mxu0 %v1540
      %1634 = vmatpush1.bf16.msra.mxu0 %v1539
      %1635 = vmatprep.subr.bf16.mxu0 %v1548
      %1636 = vmatpush1.bf16.msra.mxu0 %v1547
      %1637 = vmatprep.subr.bf16.mxu0 0
      %1638 = vmatpush1.bf16.msra.mxu0 0
      %1639 = vmatprep.subr.bf16.mxu0 0
      %1640 = vmatpush1.bf16.msra.mxu0 0
      %1641 = vmatprep.subr.bf16.mxu0 0
      %1642 = vmatpush1.bf16.msra.mxu0 0
      %1643 = vmatprep.subr.bf16.mxu0 0
      %1644 = vmatpush1.bf16.msra.mxu0 0
      %1645 = vmatprep.subr.bf16.mxu0 0
      %1646 = vmatpush1.bf16.msra.mxu0 0
      %1647 = vmatprep.subr.bf16.mxu0 0
      %1648 = vmatpush1.bf16.msra.mxu0 0
      %1649 = vmatprep.subr.bf16.mxu0 0
      %1650 = vmatpush1.bf16.msra.mxu0 0
      %1651 = vmatprep.subr.bf16.mxu0 0
      %1652 = vmatpush1.bf16.msra.mxu0 0
      %1653 = vmatprep.subr.bf16.mxu0 0
      %1654 = vmatpush1.bf16.msra.mxu0 0
      %1655 = vmatprep.subr.bf16.mxu0 0
      %1656 = vmatpush1.bf16.msra.mxu0 0
      %1657 = vmatprep.subr.bf16.mxu0 0
      %1658 = vmatpush1.bf16.msra.mxu0 0
      %1659 = vmatprep.subr.bf16.mxu0 0
      %1660 = vmatpush1.bf16.msra.mxu0 0
      %1661 = vmatprep.mubr.bf16.mxu0 0
      %1662 = vmatmul.mubr.bf16.gmra.mrb[0].mxu0 %v1586
      %v1663 = vpop.f32.mrb[0].mxu0
      %v1664 = vadd.f32 0.0, %v1663
      %v1665 = vpop.f32.mrb[0].mxu0
      %v1666 = vadd.f32 0.0, %v1665
      %v1667 = vpop.f32.mrb[0].mxu0
      %v1668 = vpop.f32.mrb[0].mxu0
      %1669 = vdwg.mxu0
      %1670 = vmatprep.subr.bf16.mxu0 %v1526
      %1671 = vmatpush1.bf16.msra.mxu0 %v1525
      %1672 = vmatprep.subr.bf16.mxu0 %v1534
      %1673 = vmatpush1.bf16.msra.mxu0 %v1533
      %1674 = vmatprep.subr.bf16.mxu0 %v1542
      %1675 = vmatpush1.bf16.msra.mxu0 %v1541
      %1676 = vmatprep.subr.bf16.mxu0 %v1550
      %1677 = vmatpush1.bf16.msra.mxu0 %v1549
      %1678 = vmatprep.subr.bf16.mxu0 0
      %1679 = vmatpush1.bf16.msra.mxu0 0
      %1680 = vmatprep.subr.bf16.mxu0 0
      %1681 = vmatpush1.bf16.msra.mxu0 0
      %1682 = vmatprep.subr.bf16.mxu0 0
      %1683 = vmatpush1.bf16.msra.mxu0 0
      %1684 = vmatprep.subr.bf16.mxu0 0
      %1685 = vmatpush1.bf16.msra.mxu0 0
      %1686 = vmatprep.subr.bf16.mxu0 0
      %1687 = vmatpush1.bf16.msra.mxu0 0
      %1688 = vmatprep.subr.bf16.mxu0 0
      %1689 = vmatpush1.bf16.msra.mxu0 0
      %1690 = vmatprep.subr.bf16.mxu0 0
      %1691 = vmatpush1.bf16.msra.mxu0 0
      %1692 = vmatprep.subr.bf16.mxu0 0
      %1693 = vmatpush1.bf16.msra.mxu0 0
      %1694 = vmatprep.subr.bf16.mxu0 0
      %1695 = vmatpush1.bf16.msra.mxu0 0
      %1696 = vmatprep.subr.bf16.mxu0 0
      %1697 = vmatpush1.bf16.msra.mxu0 0
      %1698 = vmatprep.subr.bf16.mxu0 0
      %1699 = vmatpush1.bf16.msra.mxu0 0
      %1700 = vmatprep.subr.bf16.mxu0 0
      %1701 = vmatpush1.bf16.msra.mxu0 0
      %1702 = vmatprep.mubr.bf16.mxu0 0
      %1703 = vmatmul.mubr.bf16.gmra.mrb[0].mxu0 %v1586
      %v1704 = vpop.f32.mrb[0].mxu0
      %v1705 = vadd.f32 0.0, %v1704
      %v1706 = vpop.f32.mrb[0].mxu0
      %v1707 = vadd.f32 0.0, %v1706
      %v1708 = vpop.f32.mrb[0].mxu0
      %v1709 = vpop.f32.mrb[0].mxu0
      %1710 = vdwg.mxu0
      %1711 = vmatprep.subr.bf16.mxu0 %v1528
      %1712 = vmatpush1.bf16.msra.mxu0 %v1527
      %1713 = vmatprep.subr.bf16.mxu0 %v1536
      %1714 = vmatpush1.bf16.msra.mxu0 %v1535
      %1715 = vmatprep.subr.bf16.mxu0 %v1544
      %1716 = vmatpush1.bf16.msra.mxu0 %v1543
      %1717 = vmatprep.subr.bf16.mxu0 %v1552
      %1718 = vmatpush1.bf16.msra.mxu0 %v1551
      %1719 = vmatprep.subr.bf16.mxu0 0
      %1720 = vmatpush1.bf16.msra.mxu0 0
      %1721 = vmatprep.subr.bf16.mxu0 0
      %1722 = vmatpush1.bf16.msra.mxu0 0
      %1723 = vmatprep.subr.bf16.mxu0 0
      %1724 = vmatpush1.bf16.msra.mxu0 0
      %1725 = vmatprep.subr.bf16.mxu0 0
      %1726 = vmatpush1.bf16.msra.mxu0 0
      %1727 = vmatprep.subr.bf16.mxu0 0
      %1728 = vmatpush1.bf16.msra.mxu0 0
      %1729 = vmatprep.subr.bf16.mxu0 0
      %1730 = vmatpush1.bf16.msra.mxu0 0
      %1731 = vmatprep.subr.bf16.mxu0 0
      %1732 = vmatpush1.bf16.msra.mxu0 0
      %1733 = vmatprep.subr.bf16.mxu0 0
      %1734 = vmatpush1.bf16.msra.mxu0 0
      %1735 = vmatprep.subr.bf16.mxu0 0
      %1736 = vmatpush1.bf16.msra.mxu0 0
      %1737 = vmatprep.subr.bf16.mxu0 0
      %1738 = vmatpush1.bf16.msra.mxu0 0
      %1739 = vmatprep.subr.bf16.mxu0 0
      %1740 = vmatpush1.bf16.msra.mxu0 0
      %1741 = vmatprep.subr.bf16.mxu0 0
      %1742 = vmatpush1.bf16.msra.mxu0 0
      %1743 = vmatprep.mubr.bf16.mxu0 0
      %1744 = vmatmul.mubr.bf16.gmra.mrb[0].mxu0 %v1586
      %v1745 = vpop.f32.mrb[0].mxu0
      %v1746 = vadd.f32 0.0, %v1745
      %v1747 = vpop.f32.mrb[0].mxu0
      %v1748 = vadd.f32 0.0, %v1747
      %v1749 = vpop.f32.mrb[0].mxu0
      %v1750 = vpop.f32.mrb[0].mxu0
      %1751 = vdwg.mxu0
      %v1752 = vmul.f32 %v1263, %v1623
      %v1753 = vmul.f32 %v1265, %v1625
      %v1754 = vmul.f32 %v1304, %v1664
      %v1755 = vmul.f32 %v1306, %v1666
      %v1756 = vmul.f32 %v1345, %v1705
      %v1757 = vmul.f32 %v1347, %v1707
      %v1758 = vmul.f32 %v1386, %v1746
      %v1759 = vmul.f32 %v1388, %v1748
      %v1760 = vld [vmem:[%s15] sm:$0xf]
      %v1761 = vld [vmem:[%s15 + $0x4] sm:$0xf]
      %v1762 = vld [vmem:[%s15 + $0x8] sm:$0xf]
      %v1763 = vld [vmem:[%s15 + $0xc] sm:$0xf]
      %v1764 = vld [vmem:[%s15 + $0x10] sm:$0xf]
      %v1765 = vld [vmem:[%s15 + $0x14] sm:$0xf]
      %v1766 = vld [vmem:[%s15 + $0x18] sm:$0xf]
      %v1767 = vld [vmem:[%s15 + $0x1c] sm:$0xf]
      %v1768 = vld [vmem:[%s15 + $0x20] sm:$0xf]
      %v1769 = vld [vmem:[%s15 + $0x24] sm:$0xf]
      %v1770 = vld [vmem:[%s15 + $0x28] sm:$0xf]
      %v1771 = vld [vmem:[%s15 + $0x2c] sm:$0xf]
      %v1772 = vld [vmem:[%s15 + $0x30] sm:$0xf]
      %v1773 = vld [vmem:[%s15 + $0x34] sm:$0xf]
      %v1774 = vld [vmem:[%s15 + $0x38] sm:$0xf]
      %v1775 = vld [vmem:[%s15 + $0x3c] sm:$0xf]
      %v1776 = vld [vmem:[%s15 + $0x40] sm:$0xf]
      %v1777 = vld [vmem:[%s15 + $0x44] sm:$0xf]
      %v1778 = vld [vmem:[%s15 + $0x48] sm:$0xf]
      %v1779 = vld [vmem:[%s15 + $0x4c] sm:$0xf]
      %v1780 = vld [vmem:[%s15 + $0x50] sm:$0xf]
      %v1781 = vld [vmem:[%s15 + $0x54] sm:$0xf]
      %v1782 = vld [vmem:[%s15 + $0x58] sm:$0xf]
      %v1783 = vld [vmem:[%s15 + $0x5c] sm:$0xf]
      %v1784 = vld [vmem:[%s15 + $0x60] sm:$0xf]
      %v1785 = vld [vmem:[%s15 + $0x64] sm:$0xf]
      %v1786 = vld [vmem:[%s15 + $0x68] sm:$0xf]
      %v1787 = vld [vmem:[%s15 + $0x6c] sm:$0xf]
      %v1788 = vld [vmem:[%s15 + $0x70] sm:$0xf]
      %v1789 = vld [vmem:[%s15 + $0x74] sm:$0xf]
      %v1790 = vld [vmem:[%s15 + $0x78] sm:$0xf]
      %v1791 = vld [vmem:[%s15 + $0x7c] sm:$0xf]
      %v1792 = vld [vmem:[%s15 + $0x80] sm:$0xf]
      %v1793 = vld [vmem:[%s15 + $0x84] sm:$0xf]
      %v1794 = vld [vmem:[%s15 + $0x88] sm:$0xf]
      %v1795 = vld [vmem:[%s15 + $0x8c] sm:$0xf]
      %v1796 = vld [vmem:[%s15 + $0x90] sm:$0xf]
      %v1797 = vld [vmem:[%s15 + $0x94] sm:$0xf]
      %v1798 = vld [vmem:[%s15 + $0x98] sm:$0xf]
      %v1799 = vld [vmem:[%s15 + $0x9c] sm:$0xf]
      %v1800 = vld [vmem:[%s15 + $0xa0] sm:$0xf]
      %v1801 = vld [vmem:[%s15 + $0xa4] sm:$0xf]
      %v1802 = vld [vmem:[%s15 + $0xa8] sm:$0xf]
      %v1803 = vld [vmem:[%s15 + $0xac] sm:$0xf]
      %v1804 = vld [vmem:[%s15 + $0xb0] sm:$0xf]
      %v1805 = vld [vmem:[%s15 + $0xb4] sm:$0xf]
      %v1806 = vld [vmem:[%s15 + $0xb8] sm:$0xf]
      %v1807 = vld [vmem:[%s15 + $0xbc] sm:$0xf]
      %v1808 = vld [vmem:[%s15 + $0xc0] sm:$0xf]
      %v1809 = vld [vmem:[%s15 + $0xc4] sm:$0xf]
      %v1810 = vld [vmem:[%s15 + $0xc8] sm:$0xf]
      %v1811 = vld [vmem:[%s15 + $0xcc] sm:$0xf]
      %v1812 = vld [vmem:[%s15 + $0xd0] sm:$0xf]
      %v1813 = vld [vmem:[%s15 + $0xd4] sm:$0xf]
      %v1814 = vld [vmem:[%s15 + $0xd8] sm:$0xf]
      %v1815 = vld [vmem:[%s15 + $0xdc] sm:$0xf]
      %v1816 = vld [vmem:[%s15 + $0xe0] sm:$0xf]
      %v1817 = vld [vmem:[%s15 + $0xe4] sm:$0xf]
      %v1818 = vld [vmem:[%s15 + $0xe8] sm:$0xf]
      %v1819 = vld [vmem:[%s15 + $0xec] sm:$0xf]
      %v1820 = vld [vmem:[%s15 + $0xf0] sm:$0xf]
      %v1821 = vld [vmem:[%s15 + $0xf4] sm:$0xf]
      %v1822 = vld [vmem:[%s15 + $0xf8] sm:$0xf]
      %v1823 = vld [vmem:[%s15 + $0xfc] sm:$0xf]
      %v1824 = vld [vmem:[%s15 + $0x100] sm:$0xf]
      %v1825 = vld [vmem:[%s15 + $0x104] sm:$0xf]
      %v1826 = vld [vmem:[%s15 + $0x108] sm:$0xf]
      %v1827 = vld [vmem:[%s15 + $0x10c] sm:$0xf]
      %v1828 = vld [vmem:[%s15 + $0x110] sm:$0xf]
      %v1829 = vld [vmem:[%s15 + $0x114] sm:$0xf]
      %v1830 = vld [vmem:[%s15 + $0x118] sm:$0xf]
      %v1831 = vld [vmem:[%s15 + $0x11c] sm:$0xf]
      %v1832 = vld [vmem:[%s15 + $0x120] sm:$0xf]
      %v1833 = vld [vmem:[%s15 + $0x124] sm:$0xf]
      %v1834 = vld [vmem:[%s15 + $0x128] sm:$0xf]
      %v1835 = vld [vmem:[%s15 + $0x12c] sm:$0xf]
      %v1836 = vld [vmem:[%s15 + $0x130] sm:$0xf]
      %v1837 = vld [vmem:[%s15 + $0x134] sm:$0xf]
      %v1838 = vld [vmem:[%s15 + $0x138] sm:$0xf]
      %v1839 = vld [vmem:[%s15 + $0x13c] sm:$0xf]
      %v1840 = vld [vmem:[%s15 + $0x140] sm:$0xf]
      %v1841 = vld [vmem:[%s15 + $0x144] sm:$0xf]
      %v1842 = vld [vmem:[%s15 + $0x148] sm:$0xf]
      %v1843 = vld [vmem:[%s15 + $0x14c] sm:$0xf]
      %v1844 = vld [vmem:[%s15 + $0x150] sm:$0xf]
      %v1845 = vld [vmem:[%s15 + $0x154] sm:$0xf]
      %v1846 = vld [vmem:[%s15 + $0x158] sm:$0xf]
      %v1847 = vld [vmem:[%s15 + $0x15c] sm:$0xf]
      %v1848 = vld [vmem:[%s15 + $0x160] sm:$0xf]
      %v1849 = vld [vmem:[%s15 + $0x164] sm:$0xf]
      %v1850 = vld [vmem:[%s15 + $0x168] sm:$0xf]
      %v1851 = vld [vmem:[%s15 + $0x16c] sm:$0xf]
      %v1852 = vld [vmem:[%s15 + $0x170] sm:$0xf]
      %v1853 = vld [vmem:[%s15 + $0x174] sm:$0xf]
      %v1854 = vld [vmem:[%s15 + $0x178] sm:$0xf]
      %v1855 = vld [vmem:[%s15 + $0x17c] sm:$0xf]
      %v1856 = vld [vmem:[%s15 + $0x180] sm:$0xf]
      %v1857 = vld [vmem:[%s15 + $0x184] sm:$0xf]
      %v1858 = vld [vmem:[%s15 + $0x188] sm:$0xf]
      %v1859 = vld [vmem:[%s15 + $0x18c] sm:$0xf]
      %v1860 = vld [vmem:[%s15 + $0x190] sm:$0xf]
      %v1861 = vld [vmem:[%s15 + $0x194] sm:$0xf]
      %v1862 = vld [vmem:[%s15 + $0x198] sm:$0xf]
      %v1863 = vld [vmem:[%s15 + $0x19c] sm:$0xf]
      %v1864 = vld [vmem:[%s15 + $0x1a0] sm:$0xf]
      %v1865 = vld [vmem:[%s15 + $0x1a4] sm:$0xf]
      %v1866 = vld [vmem:[%s15 + $0x1a8] sm:$0xf]
      %v1867 = vld [vmem:[%s15 + $0x1ac] sm:$0xf]
      %v1868 = vld [vmem:[%s15 + $0x1b0] sm:$0xf]
      %v1869 = vld [vmem:[%s15 + $0x1b4] sm:$0xf]
      %v1870 = vld [vmem:[%s15 + $0x1b8] sm:$0xf]
      %v1871 = vld [vmem:[%s15 + $0x1bc] sm:$0xf]
      %v1872 = vld [vmem:[%s15 + $0x1c0] sm:$0xf]
      %v1873 = vld [vmem:[%s15 + $0x1c4] sm:$0xf]
      %v1874 = vld [vmem:[%s15 + $0x1c8] sm:$0xf]
      %v1875 = vld [vmem:[%s15 + $0x1cc] sm:$0xf]
      %v1876 = vld [vmem:[%s15 + $0x1d0] sm:$0xf]
      %v1877 = vld [vmem:[%s15 + $0x1d4] sm:$0xf]
      %v1878 = vld [vmem:[%s15 + $0x1d8] sm:$0xf]
      %v1879 = vld [vmem:[%s15 + $0x1dc] sm:$0xf]
      %v1880 = vld [vmem:[%s15 + $0x1e0] sm:$0xf]
      %v1881 = vld [vmem:[%s15 + $0x1e4] sm:$0xf]
      %v1882 = vld [vmem:[%s15 + $0x1e8] sm:$0xf]
      %v1883 = vld [vmem:[%s15 + $0x1ec] sm:$0xf]
      %v1884 = vld [vmem:[%s15 + $0x1f0] sm:$0xf]
      %v1885 = vld [vmem:[%s15 + $0x1f4] sm:$0xf]
      %v1886 = vld [vmem:[%s15 + $0x1f8] sm:$0xf]
      %v1887 = vld [vmem:[%s15 + $0x1fc] sm:$0xf]
      %v1888 = vpack.c.bf16 %v1752, %v1752
      %v1889 = vpack.c.bf16 %v1753, %v1753
      %v1890 = vpack.c.bf16 %v1754, %v1754
      %v1891 = vpack.c.bf16 %v1755, %v1755
      %v1892 = vpack.c.bf16 %v1756, %v1756
      %v1893 = vpack.c.bf16 %v1757, %v1757
      %v1894 = vpack.c.bf16 %v1758, %v1758
      %v1895 = vpack.c.bf16 %v1759, %v1759
      %v1896 = vld [vmem:[%s16] sm:$0x1]
      %v1898 = vlaneseq
      %v1899 = vshrl.u32 %v1898, 7
      %v1900 = vsub.s32 0, %v1899
      %v1901 = vrot.slane %v1896, %v1900
      %v2031 = vunpack.c.l.b16 %v1760
      %v2032 = vunpack.c.l.b16 %v1761
      %v2033 = vunpack.c.l.b16 %v1762
      %v2034 = vunpack.c.l.b16 %v1763
      %v2035 = vunpack.c.l.b16 %v1764
      %v2036 = vunpack.c.l.b16 %v1765
      %v2037 = vunpack.c.l.b16 %v1766
      %v2038 = vunpack.c.l.b16 %v1767
      %v2039 = vunpack.c.l.b16 %v1768
      %v2040 = vunpack.c.l.b16 %v1769
      %v2041 = vunpack.c.l.b16 %v1770
      %v2042 = vunpack.c.l.b16 %v1771
      %v2043 = vunpack.c.l.b16 %v1772
      %v2044 = vunpack.c.l.b16 %v1773
      %v2045 = vunpack.c.l.b16 %v1774
      %v2046 = vunpack.c.l.b16 %v1775
      %v2047 = vunpack.c.l.b16 %v1776
      %v2048 = vunpack.c.l.b16 %v1777
      %v2049 = vunpack.c.l.b16 %v1778
      %v2050 = vunpack.c.l.b16 %v1779
      %v2051 = vunpack.c.l.b16 %v1780
      %v2052 = vunpack.c.l.b16 %v1781
      %v2053 = vunpack.c.l.b16 %v1782
      %v2054 = vunpack.c.l.b16 %v1783
      %v2055 = vunpack.c.l.b16 %v1784
      %v2056 = vunpack.c.l.b16 %v1785
      %v2057 = vunpack.c.l.b16 %v1786
      %v2058 = vunpack.c.l.b16 %v1787
      %v2059 = vunpack.c.l.b16 %v1788
      %v2060 = vunpack.c.l.b16 %v1789
      %v2061 = vunpack.c.l.b16 %v1790
      %v2062 = vunpack.c.l.b16 %v1791
      %v2063 = vunpack.c.l.b16 %v1792
      %v2064 = vunpack.c.l.b16 %v1793
      %v2065 = vunpack.c.l.b16 %v1794
      %v2066 = vunpack.c.l.b16 %v1795
      %v2067 = vunpack.c.l.b16 %v1796
      %v2068 = vunpack.c.l.b16 %v1797
      %v2069 = vunpack.c.l.b16 %v1798
      %v2070 = vunpack.c.l.b16 %v1799
      %v2071 = vunpack.c.l.b16 %v1800
      %v2072 = vunpack.c.l.b16 %v1801
      %v2073 = vunpack.c.l.b16 %v1802
      %v2074 = vunpack.c.l.b16 %v1803
      %v2075 = vunpack.c.l.b16 %v1804
      %v2076 = vunpack.c.l.b16 %v1805
      %v2077 = vunpack.c.l.b16 %v1806
      %v2078 = vunpack.c.l.b16 %v1807
      %v2079 = vunpack.c.l.b16 %v1808
      %v2080 = vunpack.c.l.b16 %v1809
      %v2081 = vunpack.c.l.b16 %v1810
      %v2082 = vunpack.c.l.b16 %v1811
      %v2083 = vunpack.c.l.b16 %v1812
      %v2084 = vunpack.c.l.b16 %v1813
      %v2085 = vunpack.c.l.b16 %v1814
      %v2086 = vunpack.c.l.b16 %v1815
      %v2087 = vunpack.c.l.b16 %v1816
      %v2088 = vunpack.c.l.b16 %v1817
      %v2089 = vunpack.c.l.b16 %v1818
      %v2090 = vunpack.c.l.b16 %v1819
      %v2091 = vunpack.c.l.b16 %v1820
      %v2092 = vunpack.c.l.b16 %v1821
      %v2093 = vunpack.c.l.b16 %v1822
      %v2094 = vunpack.c.l.b16 %v1823
      %v2095 = vunpack.c.l.b16 %v1824
      %v2096 = vunpack.c.l.b16 %v1825
      %v2097 = vunpack.c.l.b16 %v1826
      %v2098 = vunpack.c.l.b16 %v1827
      %v2099 = vunpack.c.l.b16 %v1828
      %v2100 = vunpack.c.l.b16 %v1829
      %v2101 = vunpack.c.l.b16 %v1830
      %v2102 = vunpack.c.l.b16 %v1831
      %v2103 = vunpack.c.l.b16 %v1832
      %v2104 = vunpack.c.l.b16 %v1833
      %v2105 = vunpack.c.l.b16 %v1834
      %v2106 = vunpack.c.l.b16 %v1835
      %v2107 = vunpack.c.l.b16 %v1836
      %v2108 = vunpack.c.l.b16 %v1837
      %v2109 = vunpack.c.l.b16 %v1838
      %v2110 = vunpack.c.l.b16 %v1839
      %v2111 = vunpack.c.l.b16 %v1840
      %v2112 = vunpack.c.l.b16 %v1841
      %v2113 = vunpack.c.l.b16 %v1842
      %v2114 = vunpack.c.l.b16 %v1843
      %v2115 = vunpack.c.l.b16 %v1844
      %v2116 = vunpack.c.l.b16 %v1845
      %v2117 = vunpack.c.l.b16 %v1846
      %v2118 = vunpack.c.l.b16 %v1847
      %v2119 = vunpack.c.l.b16 %v1848
      %v2120 = vunpack.c.l.b16 %v1849
      %v2121 = vunpack.c.l.b16 %v1850
      %v2122 = vunpack.c.l.b16 %v1851
      %v2123 = vunpack.c.l.b16 %v1852
      %v2124 = vunpack.c.l.b16 %v1853
      %v2125 = vunpack.c.l.b16 %v1854
      %v2126 = vunpack.c.l.b16 %v1855
      %v2127 = vunpack.c.l.b16 %v1856
      %v2128 = vunpack.c.l.b16 %v1857
      %v2129 = vunpack.c.l.b16 %v1858
      %v2130 = vunpack.c.l.b16 %v1859
      %v2131 = vunpack.c.l.b16 %v1860
      %v2132 = vunpack.c.l.b16 %v1861
      %v2133 = vunpack.c.l.b16 %v1862
      %v2134 = vunpack.c.l.b16 %v1863
      %v2135 = vunpack.c.l.b16 %v1864
      %v2136 = vunpack.c.l.b16 %v1865
      %v2137 = vunpack.c.l.b16 %v1866
      %v2138 = vunpack.c.l.b16 %v1867
      %v2139 = vunpack.c.l.b16 %v1868
      %v2140 = vunpack.c.l.b16 %v1869
      %v2141 = vunpack.c.l.b16 %v1870
      %v2142 = vunpack.c.l.b16 %v1871
      %v2143 = vunpack.c.l.b16 %v1872
      %v2144 = vunpack.c.l.b16 %v1873
      %v2145 = vunpack.c.l.b16 %v1874
      %v2146 = vunpack.c.l.b16 %v1875
      %v2147 = vunpack.c.l.b16 %v1876
      %v2148 = vunpack.c.l.b16 %v1877
      %v2149 = vunpack.c.l.b16 %v1878
      %v2150 = vunpack.c.l.b16 %v1879
      %v2151 = vunpack.c.l.b16 %v1880
      %v2152 = vunpack.c.l.b16 %v1881
      %v2153 = vunpack.c.l.b16 %v1882
      %v2154 = vunpack.c.l.b16 %v1883
      %v2155 = vunpack.c.l.b16 %v1884
      %v2156 = vunpack.c.l.b16 %v1885
      %v2157 = vunpack.c.l.b16 %v1886
      %v2158 = vunpack.c.l.b16 %v1887
      %v2159 = vpack.c.b16 %v2032, %v2031
      %v2160 = vpack.c.b16 %v2034, %v2033
      %v2161 = vpack.c.b16 %v2036, %v2035
      %v2162 = vpack.c.b16 %v2038, %v2037
      %v2163 = vpack.c.b16 %v2040, %v2039
      %v2164 = vpack.c.b16 %v2042, %v2041
      %v2165 = vpack.c.b16 %v2044, %v2043
      %v2166 = vpack.c.b16 %v2046, %v2045
      %v2167 = vpack.c.b16 %v2048, %v2047
      %v2168 = vpack.c.b16 %v2050, %v2049
      %v2169 = vpack.c.b16 %v2052, %v2051
      %v2170 = vpack.c.b16 %v2054, %v2053
      %v2171 = vpack.c.b16 %v2056, %v2055
      %v2172 = vpack.c.b16 %v2058, %v2057
      %v2173 = vpack.c.b16 %v2060, %v2059
      %v2174 = vpack.c.b16 %v2062, %v2061
      %v2175 = vpack.c.b16 %v2064, %v2063
      %v2176 = vpack.c.b16 %v2066, %v2065
      %v2177 = vpack.c.b16 %v2068, %v2067
      %v2178 = vpack.c.b16 %v2070, %v2069
      %v2179 = vpack.c.b16 %v2072, %v2071
      %v2180 = vpack.c.b16 %v2074, %v2073
      %v2181 = vpack.c.b16 %v2076, %v2075
      %v2182 = vpack.c.b16 %v2078, %v2077
      %v2183 = vpack.c.b16 %v2080, %v2079
      %v2184 = vpack.c.b16 %v2082, %v2081
      %v2185 = vpack.c.b16 %v2084, %v2083
      %v2186 = vpack.c.b16 %v2086, %v2085
      %v2187 = vpack.c.b16 %v2088, %v2087
      %v2188 = vpack.c.b16 %v2090, %v2089
      %v2189 = vpack.c.b16 %v2092, %v2091
      %v2190 = vpack.c.b16 %v2094, %v2093
      %v2191 = vpack.c.b16 %v2096, %v2095
      %v2192 = vpack.c.b16 %v2098, %v2097
      %v2193 = vpack.c.b16 %v2100, %v2099
      %v2194 = vpack.c.b16 %v2102, %v2101
      %v2195 = vpack.c.b16 %v2104, %v2103
      %v2196 = vpack.c.b16 %v2106, %v2105
      %v2197 = vpack.c.b16 %v2108, %v2107
      %v2198 = vpack.c.b16 %v2110, %v2109
      %v2199 = vpack.c.b16 %v2112, %v2111
      %v2200 = vpack.c.b16 %v2114, %v2113
      %v2201 = vpack.c.b16 %v2116, %v2115
      %v2202 = vpack.c.b16 %v2118, %v2117
      %v2203 = vpack.c.b16 %v2120, %v2119
      %v2204 = vpack.c.b16 %v2122, %v2121
      %v2205 = vpack.c.b16 %v2124, %v2123
      %v2206 = vpack.c.b16 %v2126, %v2125
      %v2207 = vpack.c.b16 %v2128, %v2127
      %v2208 = vpack.c.b16 %v2130, %v2129
      %v2209 = vpack.c.b16 %v2132, %v2131
      %v2210 = vpack.c.b16 %v2134, %v2133
      %v2211 = vpack.c.b16 %v2136, %v2135
      %v2212 = vpack.c.b16 %v2138, %v2137
      %v2213 = vpack.c.b16 %v2140, %v2139
      %v2214 = vpack.c.b16 %v2142, %v2141
      %v2215 = vpack.c.b16 %v2144, %v2143
      %v2216 = vpack.c.b16 %v2146, %v2145
      %v2217 = vpack.c.b16 %v2148, %v2147
      %v2218 = vpack.c.b16 %v2150, %v2149
      %v2219 = vpack.c.b16 %v2152, %v2151
      %v2220 = vpack.c.b16 %v2154, %v2153
      %v2221 = vpack.c.b16 %v2156, %v2155
      %v2222 = vpack.c.b16 %v2158, %v2157
      %2287 = vmatprep.subr.bf16.mxu0 0
      %2288 = vmatpush1.bf16.msra.mxu0 %v2159
      %2289 = vmatprep.subr.bf16.mxu0 0
      %2290 = vmatpush1.bf16.msra.mxu0 %v2160
      %2291 = vmatprep.subr.bf16.mxu0 0
      %2292 = vmatpush1.bf16.msra.mxu0 %v2161
      %2293 = vmatprep.subr.bf16.mxu0 0
      %2294 = vmatpush1.bf16.msra.mxu0 %v2162
      %2295 = vmatprep.subr.bf16.mxu0 0
      %2296 = vmatpush1.bf16.msra.mxu0 %v2163
      %2297 = vmatprep.subr.bf16.mxu0 0
      %2298 = vmatpush1.bf16.msra.mxu0 %v2164
      %2299 = vmatprep.subr.bf16.mxu0 0
      %2300 = vmatpush1.bf16.msra.mxu0 %v2165
      %2301 = vmatprep.subr.bf16.mxu0 0
      %2302 = vmatpush1.bf16.msra.mxu0 %v2166
      %2303 = vmatprep.subr.bf16.mxu0 0
      %2304 = vmatpush1.bf16.msra.mxu0 %v2167
      %2305 = vmatprep.subr.bf16.mxu0 0
      %2306 = vmatpush1.bf16.msra.mxu0 %v2168
      %2307 = vmatprep.subr.bf16.mxu0 0
      %2308 = vmatpush1.bf16.msra.mxu0 %v2169
      %2309 = vmatprep.subr.bf16.mxu0 0
      %2310 = vmatpush1.bf16.msra.mxu0 %v2170
      %2311 = vmatprep.subr.bf16.mxu0 0
      %2312 = vmatpush1.bf16.msra.mxu0 %v2171
      %2313 = vmatprep.subr.bf16.mxu0 0
      %2314 = vmatpush1.bf16.msra.mxu0 %v2172
      %2315 = vmatprep.subr.bf16.mxu0 0
      %2316 = vmatpush1.bf16.msra.mxu0 %v2173
      %2317 = vmatprep.subr.bf16.mxu0 0
      %2318 = vmatpush1.bf16.msra.mxu0 %v2174
      %2319 = vmatprep.mubr.bf16.mxu0 %v1889
      %2320 = vmatmul.mubr.bf16.gmra.mrb[0].mxu0 %v1888
      %v2321 = vpop.f32.mrb[0].mxu0
      %v2322 = vadd.f32 %v1901, %v2321
      %v2323 = vpop.f32.mrb[0].mxu0
      %v2324 = vpop.f32.mrb[0].mxu0
      %v2325 = vpop.f32.mrb[0].mxu0
      %2326 = vdwg.mxu0
      %2327 = vmatprep.subr.bf16.mxu0 0
      %2328 = vmatpush1.bf16.msra.mxu0 %v2175
      %2329 = vmatprep.subr.bf16.mxu0 0
      %2330 = vmatpush1.bf16.msra.mxu0 %v2176
      %2331 = vmatprep.subr.bf16.mxu0 0
      %2332 = vmatpush1.bf16.msra.mxu0 %v2177
      %2333 = vmatprep.subr.bf16.mxu0 0
      %2334 = vmatpush1.bf16.msra.mxu0 %v2178
      %2335 = vmatprep.subr.bf16.mxu0 0
      %2336 = vmatpush1.bf16.msra.mxu0 %v2179
      %2337 = vmatprep.subr.bf16.mxu0 0
      %2338 = vmatpush1.bf16.msra.mxu0 %v2180
      %2339 = vmatprep.subr.bf16.mxu0 0
      %2340 = vmatpush1.bf16.msra.mxu0 %v2181
      %2341 = vmatprep.subr.bf16.mxu0 0
      %2342 = vmatpush1.bf16.msra.mxu0 %v2182
      %2343 = vmatprep.subr.bf16.mxu0 0
      %2344 = vmatpush1.bf16.msra.mxu0 %v2183
      %2345 = vmatprep.subr.bf16.mxu0 0
      %2346 = vmatpush1.bf16.msra.mxu0 %v2184
      %2347 = vmatprep.subr.bf16.mxu0 0
      %2348 = vmatpush1.bf16.msra.mxu0 %v2185
      %2349 = vmatprep.subr.bf16.mxu0 0
      %2350 = vmatpush1.bf16.msra.mxu0 %v2186
      %2351 = vmatprep.subr.bf16.mxu0 0
      %2352 = vmatpush1.bf16.msra.mxu0 %v2187
      %2353 = vmatprep.subr.bf16.mxu0 0
      %2354 = vmatpush1.bf16.msra.mxu0 %v2188
      %2355 = vmatprep.subr.bf16.mxu0 0
      %2356 = vmatpush1.bf16.msra.mxu0 %v2189
      %2357 = vmatprep.subr.bf16.mxu0 0
      %2358 = vmatpush1.bf16.msra.mxu0 %v2190
      %2359 = vmatprep.mubr.bf16.mxu0 %v1891
      %2360 = vmatmul.mubr.bf16.gmra.mrb[0].mxu0 %v1890
      %v2361 = vpop.f32.mrb[0].mxu0
      %v2362 = vadd.f32 %v2322, %v2361
      %v2363 = vpop.f32.mrb[0].mxu0
      %v2364 = vpop.f32.mrb[0].mxu0
      %v2365 = vpop.f32.mrb[0].mxu0
      %2366 = vdwg.mxu0
      %2367 = vmatprep.subr.bf16.mxu0 0
      %2368 = vmatpush1.bf16.msra.mxu0 %v2191
      %2369 = vmatprep.subr.bf16.mxu0 0
      %2370 = vmatpush1.bf16.msra.mxu0 %v2192
      %2371 = vmatprep.subr.bf16.mxu0 0
      %2372 = vmatpush1.bf16.msra.mxu0 %v2193
      %2373 = vmatprep.subr.bf16.mxu0 0
      %2374 = vmatpush1.bf16.msra.mxu0 %v2194
      %2375 = vmatprep.subr.bf16.mxu0 0
      %2376 = vmatpush1.bf16.msra.mxu0 %v2195
      %2377 = vmatprep.subr.bf16.mxu0 0
      %2378 = vmatpush1.bf16.msra.mxu0 %v2196
      %2379 = vmatprep.subr.bf16.mxu0 0
      %2380 = vmatpush1.bf16.msra.mxu0 %v2197
      %2381 = vmatprep.subr.bf16.mxu0 0
      %2382 = vmatpush1.bf16.msra.mxu0 %v2198
      %2383 = vmatprep.subr.bf16.mxu0 0
      %2384 = vmatpush1.bf16.msra.mxu0 %v2199
      %2385 = vmatprep.subr.bf16.mxu0 0
      %2386 = vmatpush1.bf16.msra.mxu0 %v2200
      %2387 = vmatprep.subr.bf16.mxu0 0
      %2388 = vmatpush1.bf16.msra.mxu0 %v2201
      %2389 = vmatprep.subr.bf16.mxu0 0
      %2390 = vmatpush1.bf16.msra.mxu0 %v2202
      %2391 = vmatprep.subr.bf16.mxu0 0
      %2392 = vmatpush1.bf16.msra.mxu0 %v2203
      %2393 = vmatprep.subr.bf16.mxu0 0
      %2394 = vmatpush1.bf16.msra.mxu0 %v2204
      %2395 = vmatprep.subr.bf16.mxu0 0
      %2396 = vmatpush1.bf16.msra.mxu0 %v2205
      %2397 = vmatprep.subr.bf16.mxu0 0
      %2398 = vmatpush1.bf16.msra.mxu0 %v2206
      %2399 = vmatprep.mubr.bf16.mxu0 %v1893
      %2400 = vmatmul.mubr.bf16.gmra.mrb[0].mxu0 %v1892
      %v2401 = vpop.f32.mrb[0].mxu0
      %v2402 = vadd.f32 %v2362, %v2401
      %v2403 = vpop.f32.mrb[0].mxu0
      %v2404 = vpop.f32.mrb[0].mxu0
      %v2405 = vpop.f32.mrb[0].mxu0
      %2406 = vdwg.mxu0
      %2407 = vmatprep.subr.bf16.mxu0 0
      %2408 = vmatpush1.bf16.msra.mxu0 %v2207
      %2409 = vmatprep.subr.bf16.mxu0 0
      %2410 = vmatpush1.bf16.msra.mxu0 %v2208
      %2411 = vmatprep.subr.bf16.mxu0 0
      %2412 = vmatpush1.bf16.msra.mxu0 %v2209
      %2413 = vmatprep.subr.bf16.mxu0 0
      %2414 = vmatpush1.bf16.msra.mxu0 %v2210
      %2415 = vmatprep.subr.bf16.mxu0 0
      %2416 = vmatpush1.bf16.msra.mxu0 %v2211
      %2417 = vmatprep.subr.bf16.mxu0 0
      %2418 = vmatpush1.bf16.msra.mxu0 %v2212
      %2419 = vmatprep.subr.bf16.mxu0 0
      %2420 = vmatpush1.bf16.msra.mxu0 %v2213
      %2421 = vmatprep.subr.bf16.mxu0 0
      %2422 = vmatpush1.bf16.msra.mxu0 %v2214
      %2423 = vmatprep.subr.bf16.mxu0 0
      %2424 = vmatpush1.bf16.msra.mxu0 %v2215
      %2425 = vmatprep.subr.bf16.mxu0 0
      %2426 = vmatpush1.bf16.msra.mxu0 %v2216
      %2427 = vmatprep.subr.bf16.mxu0 0
      %2428 = vmatpush1.bf16.msra.mxu0 %v2217
      %2429 = vmatprep.subr.bf16.mxu0 0
      %2430 = vmatpush1.bf16.msra.mxu0 %v2218
      %2431 = vmatprep.subr.bf16.mxu0 0
      %2432 = vmatpush1.bf16.msra.mxu0 %v2219
      %2433 = vmatprep.subr.bf16.mxu0 0
      %2434 = vmatpush1.bf16.msra.mxu0 %v2220
      %2435 = vmatprep.subr.bf16.mxu0 0
      %2436 = vmatpush1.bf16.msra.mxu0 %v2221
      %2437 = vmatprep.subr.bf16.mxu0 0
      %2438 = vmatpush1.bf16.msra.mxu0 %v2222
      %2439 = vmatprep.mubr.bf16.mxu0 %v1895
      %2440 = vmatmul.mubr.bf16.gmra.mrb[0].mxu0 %v1894
      %v2441 = vpop.f32.mrb[0].mxu0
      %v2442 = vadd.f32 %v2402, %v2441
      %v2443 = vpop.f32.mrb[0].mxu0
      %v2444 = vpop.f32.mrb[0].mxu0
      %v2445 = vpop.f32.mrb[0].mxu0
      %2446 = vdwg.mxu0
      %2447 = vst [vmem:[%s635] sm:$0xff] %v2442
      %v2448 = vlaneseq
      %v2449 = vand.u32 %v2448, 127
      %vm2450 = vcmp.lt.s32.totalorder %v2449, 8
      %2452 = vset.pattern.permute.xlu0 0
      %2453 = vperm.xlu0 %2452, %v2442
      %v2454 = vpop.permute.xlu0 %2453
      %vm2456 = vcmp.gt.f32.partialorder %v2442, %v2454
      %vm2457 = vmand %vm2456, %vm2450
      %v2458 = vsel %vm2457, 1.0, 0.0
      %2459 = vadd.xlane.f32.xlu0 %v2458
      %v2460 = vpop.xlane.xlu0 %2459
      %vm2461 = vcmp.eq.f32.partialorder %v2460, 0.0
      %v2462 = vsel %vm2461, 1, 0
      %v2463 = vcvt.s32.f32 %v2462
      %vm2464 = vcmp.eq.s32.totalorder %v2449, 0
      %v2465 = vsel %vm2464, %v2463, %v2458
      %2466 = vst [vmem:[%s639] sm:$0xff] %v2465
      %p2467 = scmp.lt.s32.totalorder %s36, 1
      %s2468 = scalar_select %p2467, %s36, 1
      %s2469 = smul.addr %s2468, 8
      %s2470 = scalar_lea.vmem %s17, %s2469
      %p2471 = scmp.lt.s32.totalorder %s36, 1
      %s2472 = scalar_select %p2471, %s36, 1
      %s2473 = smul.addr %s2472, 8
      %s2474 = scalar_lea.vmem %s18, %s2473
      // Predicated region
      $region85: #{docre_forward.1} parent=83 // pred_check
        %p2475 = pneg %p417
      $region86: #{docre_forward.1} parent=83 // pred_check_branch
        %2477 = sbr.rel (%p2475) target = $region88
      $region87: #{docre_forward.1} parent=83 // pred_region
        _
      $region88: #{docre_forward.1} parent=83 // pred_fallthru
        _
      // Predicated region
      $region89: #{docre_forward.1} parent=83 // pred_check
        %p2478 = pneg %p443
      $region90: #{docre_forward.1} parent=83 // pred_check_branch
        %2480 = sbr.rel (%p2478) target = $region92
      $region91: #{docre_forward.1} parent=83 // pred_region
        _
      $region92: #{docre_forward.1} parent=83 // pred_fallthru
        _
    $region84: #{docre_forward.1} parent=5 // pred_fallthru
      _
    %p2481 = scmp.le.s32.totalorder 2, %s31
    // Predicated region
    $region93: #{docre_forward.1} parent=5 // pred_check
      %p2482 = pneg %p2481
    $region94: #{docre_forward.1} parent=5 // pred_check_branch
      %2484 = sbr.rel (%p2482) target = $region96
    $region95: #{docre_forward.1} parent=5 // pred_region
      %s2485 = ssub.s32 %s31, 2
      // Predicated region
      $region97: #{docre_forward.1} parent=95 // pred_check
        %p2486 = pneg %p423
      $region98: #{docre_forward.1} parent=95 // pred_check_branch
        %2488 = sbr.rel (%p2486) target = $region100
      $region99: #{docre_forward.1} parent=95 // pred_region
        %p2489 = scmp.lt.s32.totalorder %s37, 1
        %s2490 = scalar_select %p2489, %s37, 1
        %s2491 = smul.addr %s2490, 8
        %s2492 = scalar_lea.vmem %s17, %s2491
      $region100: #{docre_forward.1} parent=95 // pred_fallthru
        _
      // Predicated region
      $region101: #{docre_forward.1} parent=95 // pred_check
        %p2493 = pneg %p449
      $region102: #{docre_forward.1} parent=95 // pred_check_branch
        %2495 = sbr.rel (%p2493) target = $region104
      $region103: #{docre_forward.1} parent=95 // pred_region
        %p2496 = scmp.lt.s32.totalorder %s37, 1
        %s2497 = scalar_select %p2496, %s37, 1
        %s2498 = smul.addr %s2497, 8
        %s2499 = scalar_lea.vmem %s18, %s2498
      $region104: #{docre_forward.1} parent=95 // pred_fallthru
        _
    $region96: #{docre_forward.1} parent=5 // pred_fallthru
      _
  $region6: #{docre_forward.1} parent=0 // loop_footer
    %s35 = sadd.s32 1, %s31
  $region7: #{docre_forward.1} parent=0 // loop_footer_branch
    %30 = sbr.rel target = $region3
  $region8: #{docre_forward.1} parent=0 // loop_exit
    _

</llo_original>
